<compile_context>
chip_gen: v7x
topology: tpu7x:2x2x1
jax: 0.10.0
libtpu: 0.0.40
codegen_flags: <defaults>
</compile_context>

<pallas_src>
import jax
import jax.numpy as jnp
from jax import lax
from jax.experimental import pallas as pl
from jax.experimental.pallas import tpu as pltpu  # noqa: F401  (TPU backend)

# ----- configuration (mirrors LSTM_dec.__init__ arguments) -------------------
INPUT_DIM = 16
HIDDEN_DIM = 32
OUTPUT_DIM = 32          # unused by forward (regressor maps to hidden_dim)
NUM_LAYERS = 1           # required for the reference forward to be shape-consistent
BATCH = 4
B_PAD = 8                # batch padded to a full 8-sublane tile
SEQ = 8
ATTN_HEAD = 2
ATTN_SIZE = 32
REG_IN = ATTN_SIZE + HIDDEN_DIM      # 64
GATES = 4 * HIDDEN_DIM               # 128 lanes: [i | f | g | o]

# ----- packed-parameter slab layout (row offsets, all multiples of 8) --------
_R_WIH = 0                           # (INPUT_DIM, 128)
_R_WHH = 16                          # (HIDDEN_DIM, 128)
_R_B = 48                            # (1, 128)  combined b_ih + b_hh
_R_WV = 56                           # (HIDDEN_DIM, ATTN_SIZE)   lanes 0:32
_R_WO = 88                           # (ATTN_SIZE, ATTN_SIZE)    lanes 0:32
_R_WREG = 120                        # (REG_IN, HIDDEN_DIM)      lanes 0:32
_R_BV = 184                          # (1, ATTN_SIZE)
_R_BO = 192                          # (1, ATTN_SIZE)
_R_BREG = 200                        # (1, HIDDEN_DIM)
SLAB_ROWS = 208                      # rounded to a multiple of 8


# --------------------------- fused single kernel ------------------------------
def _lstm_dec_kernel(x_ref, hc_ref, slab_ref, out_ref):
    """LSTM recurrence + single-key attention + regressor, all in VMEM."""
    H = HIDDEN_DIM

    # ---- unpack the packed parameter slab (static, sublane-aligned slices) --
    w_ih = slab_ref[_R_WIH:_R_WIH + INPUT_DIM, :]          # (16, 128)
    w_hh = slab_ref[_R_WHH:_R_WHH + H, :]                  # (32, 128)
    bias = slab_ref[_R_B:_R_B + 1, :]                      # (1, 128)
    wv = slab_ref[_R_WV:_R_WV + H, 0:ATTN_SIZE]            # (32, 32)
    wo = slab_ref[_R_WO:_R_WO + ATTN_SIZE, 0:ATTN_SIZE]    # (32, 32)
    wreg = slab_ref[_R_WREG:_R_WREG + REG_IN, 0:H]         # (64, 32)
    bv = slab_ref[_R_BV:_R_BV + 1, 0:ATTN_SIZE]            # (1, 32)
    bo = slab_ref[_R_BO:_R_BO + 1, 0:ATTN_SIZE]            # (1, 32)
    breg = slab_ref[_R_BREG:_R_BREG + 1, 0:H]              # (1, 32)

    h0 = hc_ref[0:B_PAD, :]                                # (8, 32)
    c0 = hc_ref[B_PAD:2 * B_PAD, :]                        # (8, 32)

    # ---- attention epilogue pieces that depend only on h0 -------------------
    # Single key/value (encoder h0) => softmax weights are identically 1, so
    # context == V projection of h0; Q/K projections are dead and omitted.
    # Placed before the recurrence so they hide under the serial chain.
    v = jnp.dot(h0, wv, preferred_element_type=jnp.float32) + bv
    attn_applied = jnp.dot(v, wo, preferred_element_type=jnp.float32) + bo

    # ---- hoisted input projection: one (S*B_PAD, D) @ (D, 4H) MXU push ------
    gx = (jnp.dot(x_ref[...], w_ih, preferred_element_type=jnp.float32)
          + bias)                                          # (64, 128) value

    # ---- hoisted lane scale/bias for a single-tanh gate activation ----------
    # gate order along lanes: [i | f | g | o]; sigmoid(x) = 0.5*tanh(0.5*x)+0.5
    col = lax.broadcasted_iota(jnp.int32, (B_PAD, GATES), 1)
    is_g = jnp.logical_and(col >= 2 * H, col < 3 * H)
    pre_scale = jnp.where(is_g, 1.0, 0.5).astype(jnp.float32)   # 1 for g, 0.5 else
    post_bias = 1.0 - pre_scale                                  # 0 for g, 0.5 else

    # ---- serial recurrence: fully unrolled straight-line code ---------------
    h, c = h0, c0
    for t in range(SEQ):
        gates = gx[t * B_PAD:(t + 1) * B_PAD, :] + jnp.dot(
            h, w_hh, preferred_element_type=jnp.float32)   # (8, 128)
        act = jnp.tanh(gates * pre_scale) * pre_scale + post_bias
        i = act[:, 0:H]
        f = act[:, H:2 * H]
        g = act[:, 2 * H:3 * H]
        o = act[:, 3 * H:4 * H]
        c = f * c + i * g
        h = o * jnp.tanh(c)
    # cn is dead -> never stored.

    # ---- regressor + ReLU ----------------------------------------------------
    concat = jnp.concatenate([attn_applied, h], axis=-1)   # (8, 64)
    y = jnp.dot(concat, wreg, preferred_element_type=jnp.float32) + breg
    y = jnp.maximum(y, 0.0)                                # (8, 32)

    # ---- lane-dense tile-aligned output slab [y | attn_applied | zeros] -----
    pad = jnp.zeros((B_PAD, 128 - H - ATTN_SIZE), jnp.float32)
    out_ref[...] = jnp.concatenate([y, attn_applied, pad], axis=-1)


# ------------------------------ parameter init --------------------------------
def init_params(key):
    ks = jax.random.split(key, 10)
    s = 0.1
    return {
        # torch nn.LSTM layout: weight_ih (4H, D), weight_hh (4H, H)
        "w_ih": s * jax.random.normal(ks[0], (4 * HIDDEN_DIM, INPUT_DIM), jnp.float32),
        "w_hh": s * jax.random.normal(ks[1], (4 * HIDDEN_DIM, HIDDEN_DIM), jnp.float32),
        "b_ih": s * jax.random.normal(ks[2], (4 * HIDDEN_DIM,), jnp.float32),
        "b_hh": s * jax.random.normal(ks[3], (4 * HIDDEN_DIM,), jnp.float32),
        # attention value + output projections (Q/K are dead for a 1-key softmax)
        "wv": s * jax.random.normal(ks[4], (HIDDEN_DIM, ATTN_SIZE), jnp.float32),
        "bv": s * jax.random.normal(ks[5], (1, ATTN_SIZE), jnp.float32),
        "wo": s * jax.random.normal(ks[6], (ATTN_SIZE, ATTN_SIZE), jnp.float32),
        "bo": s * jax.random.normal(ks[7], (1, ATTN_SIZE), jnp.float32),
        # torch nn.Linear layout: (out_features, in_features)
        "w_reg": s * jax.random.normal(ks[8], (HIDDEN_DIM, REG_IN), jnp.float32),
        "b_reg": s * jax.random.normal(ks[9], (1, HIDDEN_DIM), jnp.float32),
    }


def pack_params(params):
    """One-time, XLA-side packing of all weights into a lane-dense slab."""
    slab = jnp.zeros((SLAB_ROWS, 128), jnp.float32)
    slab = slab.at[_R_WIH:_R_WIH + INPUT_DIM, :].set(params["w_ih"].T)
    slab = slab.at[_R_WHH:_R_WHH + HIDDEN_DIM, :].set(params["w_hh"].T)
    slab = slab.at[_R_B, :].set(params["b_ih"] + params["b_hh"])
    slab = slab.at[_R_WV:_R_WV + HIDDEN_DIM, 0:ATTN_SIZE].set(params["wv"])
    slab = slab.at[_R_WO:_R_WO + ATTN_SIZE, 0:ATTN_SIZE].set(params["wo"])
    slab = slab.at[_R_WREG:_R_WREG + REG_IN, 0:HIDDEN_DIM].set(params["w_reg"].T)
    slab = slab.at[_R_BV, 0:ATTN_SIZE].set(params["bv"][0])
    slab = slab.at[_R_BO, 0:ATTN_SIZE].set(params["bo"][0])
    slab = slab.at[_R_BREG, 0:HIDDEN_DIM].set(params["b_reg"][0])
    return slab


# ------------------------------- full forward ---------------------------------
def lstm_dec_forward(x, encoder_hidden_states, slab):
    h0, c0 = encoder_hidden_states              # each (NUM_LAYERS=1, B, H)
    pad_b = B_PAD - BATCH

    # batch padded to a full 8-sublane tile; padded rows are discarded below
    x_p = jnp.pad(x, ((0, 0), (0, pad_b), (0, 0))).reshape(SEQ * B_PAD, INPUT_DIM)
    h0_p = jnp.pad(h0[0], ((0, pad_b), (0, 0)))
    c0_p = jnp.pad(c0[0], ((0, pad_b), (0, 0)))
    hc0 = jnp.concatenate([h0_p, c0_p], axis=0)  # (2*B_PAD, H)

    out = pl.pallas_call(
        _lstm_dec_kernel,
        out_shape=jax.ShapeDtypeStruct((B_PAD, 128), jnp.float32),
    )(x_p, hc0, slab)

    y_pred = out[:BATCH, :HIDDEN_DIM]
    attn_applied = out[:BATCH, HIDDEN_DIM:HIDDEN_DIM + ATTN_SIZE].reshape(
        NUM_LAYERS, BATCH, ATTN_SIZE)
    # softmax over a single key is identically 1 (no in-kernel work needed)
    attn_weights = jnp.ones((BATCH, ATTN_HEAD, 1, 1), jnp.float32)
    return y_pred, attn_weights, attn_applied


# ------------------------------ pure-JAX reference -----------------------------
def _reference_forward(x, encoder_hidden_states, params):
    h0, c0 = encoder_hidden_states
    h, c = h0[0], c0[0]
    w_ih_t = params["w_ih"].T
    w_hh_t = params["w_hh"].T
    b = (params["b_ih"] + params["b_hh"]).reshape(1, -1)
    H = HIDDEN_DIM
    for t in range(SEQ):
        gates = x[t] @ w_ih_t + h @ w_hh_t + b
        i = jax.nn.sigmoid(gates[:, 0:H])
        f = jax.nn.sigmoid(gates[:, H:2 * H])
        g = jnp.tanh(gates[:, 2 * H:3 * H])
        o = jax.nn.sigmoid(gates[:, 3 * H:4 * H])
        c = f * c + i * g
        h = o * jnp.tanh(c)
    v = h0[0] @ params["wv"] + params["bv"]
    attn_applied = v @ params["wo"] + params["bo"]
    concat = jnp.concatenate([attn_applied, h], axis=-1)
    y = jnp.maximum(concat @ params["w_reg"].T + params["b_reg"], 0.0)
    return y, attn_applied.reshape(NUM_LAYERS, BATCH, ATTN_SIZE)


if __name__ == "__main__":
    key = jax.random.PRNGKey(0)
    k_x, k_h, k_c, k_p = jax.random.split(key, 4)

    x = jax.random.normal(k_x, (SEQ, BATCH, INPUT_DIM), jnp.float32)
    h0 = jax.random.normal(k_h, (NUM_LAYERS, BATCH, HIDDEN_DIM), jnp.float32)
    c0 = jax.random.normal(k_c, (NUM_LAYERS, BATCH, HIDDEN_DIM), jnp.float32)
    params = init_params(k_p)

    # one-time parameter packing (amortized across calls in a real model)
    slab = jax.block_until_ready(pack_params(params))

    fwd = jax.jit(lstm_dec_forward)
    y_pred, attn_weights, attn_applied = fwd(x, (h0, c0), slab)
    jax.block_until_ready((y_pred, attn_weights, attn_applied))

    assert y_pred.shape == (BATCH, HIDDEN_DIM)
    assert attn_weights.shape == (BATCH, ATTN_HEAD, 1, 1)
    assert attn_applied.shape == (NUM_LAYERS, BATCH, ATTN_SIZE)

    y_ref, attn_ref = _reference_forward(x, (h0, c0), params)
    # tolerance allows for the sigmoid -> 0.5*tanh(0.5x)+0.5 rewrite and
    # MXU vs XLA f32 matmul pass differences
    assert jnp.allclose(y_pred, y_ref, rtol=1e-3, atol=1e-3)
    assert jnp.allclose(attn_applied, attn_ref, rtol=1e-3, atol=1e-3)

    print("KERNEL_OK")
</pallas_src>

<mosaic_0001>
module attributes {stable_mosaic.version = 11 : i64} {
  func.func @_lstm_dec_kernel(%arg0: memref<64x16xf32, #tpu.memory_space<vmem>>, %arg1: memref<16x32xf32, #tpu.memory_space<vmem>>, %arg2: memref<208x128xf32, #tpu.memory_space<vmem>>, %arg3: memref<8x128xf32, #tpu.memory_space<vmem>>) attributes {dimension_semantics = [], scalar_prefetch = 0 : i64, scratch_operands = 0 : i64, tpu.core_type = #tpu.core_type<tc>} {
    %c0 = arith.constant 0 : index
    %c0_0 = arith.constant 0 : index
    %0 = vector.load %arg2[%c0, %c0_0] : memref<208x128xf32, #tpu.memory_space<vmem>>, vector<16x128xf32>
    %c16 = arith.constant 16 : index
    %c0_1 = arith.constant 0 : index
    %1 = vector.load %arg2[%c16, %c0_1] : memref<208x128xf32, #tpu.memory_space<vmem>>, vector<32x128xf32>
    %c48 = arith.constant 48 : index
    %c0_2 = arith.constant 0 : index
    %2 = vector.load %arg2[%c48, %c0_2] : memref<208x128xf32, #tpu.memory_space<vmem>>, vector<1x128xf32>
    %c56 = arith.constant 56 : index
    %c0_3 = arith.constant 0 : index
    %3 = vector.load %arg2[%c56, %c0_3] : memref<208x128xf32, #tpu.memory_space<vmem>>, vector<32x32xf32>
    %c88 = arith.constant 88 : index
    %c0_4 = arith.constant 0 : index
    %4 = vector.load %arg2[%c88, %c0_4] : memref<208x128xf32, #tpu.memory_space<vmem>>, vector<32x32xf32>
    %c120 = arith.constant 120 : index
    %c0_5 = arith.constant 0 : index
    %5 = vector.load %arg2[%c120, %c0_5] : memref<208x128xf32, #tpu.memory_space<vmem>>, vector<64x32xf32>
    %c184 = arith.constant 184 : index
    %c0_6 = arith.constant 0 : index
    %6 = vector.load %arg2[%c184, %c0_6] : memref<208x128xf32, #tpu.memory_space<vmem>>, vector<1x32xf32>
    %c192 = arith.constant 192 : index
    %c0_7 = arith.constant 0 : index
    %7 = vector.load %arg2[%c192, %c0_7] : memref<208x128xf32, #tpu.memory_space<vmem>>, vector<1x32xf32>
    %c200 = arith.constant 200 : index
    %c0_8 = arith.constant 0 : index
    %8 = vector.load %arg2[%c200, %c0_8] : memref<208x128xf32, #tpu.memory_space<vmem>>, vector<1x32xf32>
    %c0_9 = arith.constant 0 : index
    %c0_10 = arith.constant 0 : index
    %9 = vector.load %arg1[%c0_9, %c0_10] : memref<16x32xf32, #tpu.memory_space<vmem>>, vector<8x32xf32>
    %c8 = arith.constant 8 : index
    %c0_11 = arith.constant 0 : index
    %10 = vector.load %arg1[%c8, %c0_11] : memref<16x32xf32, #tpu.memory_space<vmem>>, vector<8x32xf32>
    %cst = arith.constant dense<0.000000e+00> : vector<8x32xf32>
    %11 = tpu.matmul %9, %3, %cst {dimension_numbers = #tpu.dot_dimension_numbers<[1], [0], [0], [1], [0, 0, 1, 1], [], []>} : vector<8x32xf32>, vector<32x32xf32>, vector<8x32xf32> -> vector<8x32xf32>
    %12 = vector.broadcast %6 : vector<1x32xf32> to vector<8x32xf32>
    %13 = arith.addf %11, %12 : vector<8x32xf32>
    %cst_12 = arith.constant dense<0.000000e+00> : vector<8x32xf32>
    %14 = tpu.matmul %13, %4, %cst_12 {dimension_numbers = #tpu.dot_dimension_numbers<[1], [0], [0], [1], [0, 0, 1, 1], [], []>} : vector<8x32xf32>, vector<32x32xf32>, vector<8x32xf32> -> vector<8x32xf32>
    %15 = vector.broadcast %7 : vector<1x32xf32> to vector<8x32xf32>
    %16 = arith.addf %14, %15 : vector<8x32xf32>
    %c0_13 = arith.constant 0 : index
    %c0_14 = arith.constant 0 : index
    %17 = vector.load %arg0[%c0_13, %c0_14] : memref<64x16xf32, #tpu.memory_space<vmem>>, vector<64x16xf32>
    %cst_15 = arith.constant dense<0.000000e+00> : vector<64x128xf32>
    %18 = tpu.matmul %17, %0, %cst_15 {dimension_numbers = #tpu.dot_dimension_numbers<[1], [0], [0], [1], [0, 0, 1, 1], [], []>} : vector<64x16xf32>, vector<16x128xf32>, vector<64x128xf32> -> vector<64x128xf32>
    %19 = vector.broadcast %2 : vector<1x128xf32> to vector<64x128xf32>
    %20 = arith.addf %18, %19 : vector<64x128xf32>
    %21 = tpu.iota {dimensions = array<i32: 1>} : vector<8x128xi32>
    %c64_i32 = arith.constant 64 : i32
    %22 = vector.broadcast %c64_i32 : i32 to vector<8x128xi32>
    %23 = arith.cmpi sge, %21, %22 : vector<8x128xi32>
    %c96_i32 = arith.constant 96 : i32
    %24 = vector.broadcast %c96_i32 : i32 to vector<8x128xi32>
    %25 = arith.cmpi slt, %21, %24 : vector<8x128xi32>
    %26 = arith.andi %23, %25 : vector<8x128xi1>
    %cst_16 = arith.constant 1.000000e+00 : f32
    %cst_17 = arith.constant 5.000000e-01 : f32
    %27 = vector.broadcast %cst_16 : f32 to vector<8x128xf32>
    %28 = vector.broadcast %cst_17 : f32 to vector<8x128xf32>
    %29 = arith.select %26, %27, %28 : vector<8x128xi1>, vector<8x128xf32>
    %cst_18 = arith.constant 1.000000e+00 : f32
    %30 = vector.broadcast %cst_18 : f32 to vector<8x128xf32>
    %31 = arith.subf %30, %29 : vector<8x128xf32>
    %32 = vector.extract_strided_slice %20 {offsets = [0, 0], sizes = [8, 128], strides = [1, 1]} : vector<64x128xf32> to vector<8x128xf32>
    %cst_19 = arith.constant dense<0.000000e+00> : vector<8x128xf32>
    %33 = tpu.matmul %9, %1, %cst_19 {dimension_numbers = #tpu.dot_dimension_numbers<[1], [0], [0], [1], [0, 0, 1, 1], [], []>} : vector<8x32xf32>, vector<32x128xf32>, vector<8x128xf32> -> vector<8x128xf32>
    %34 = arith.addf %32, %33 : vector<8x128xf32>
    %35 = arith.mulf %34, %29 : vector<8x128xf32>
    %36 = math.tanh %35 : vector<8x128xf32>
    %37 = arith.mulf %36, %29 : vector<8x128xf32>
    %38 = arith.addf %37, %31 : vector<8x128xf32>
    %39 = vector.extract_strided_slice %38 {offsets = [0, 0], sizes = [8, 32], strides = [1, 1]} : vector<8x128xf32> to vector<8x32xf32>
    %40 = vector.extract_strided_slice %38 {offsets = [0, 32], sizes = [8, 32], strides = [1, 1]} : vector<8x128xf32> to vector<8x32xf32>
    %41 = vector.extract_strided_slice %38 {offsets = [0, 64], sizes = [8, 32], strides = [1, 1]} : vector<8x128xf32> to vector<8x32xf32>
    %42 = vector.extract_strided_slice %38 {offsets = [0, 96], sizes = [8, 32], strides = [1, 1]} : vector<8x128xf32> to vector<8x32xf32>
    %43 = arith.mulf %40, %10 : vector<8x32xf32>
    %44 = arith.mulf %39, %41 : vector<8x32xf32>
    %45 = arith.addf %43, %44 : vector<8x32xf32>
    %46 = math.tanh %45 : vector<8x32xf32>
    %47 = arith.mulf %42, %46 : vector<8x32xf32>
    %48 = vector.extract_strided_slice %20 {offsets = [8, 0], sizes = [8, 128], strides = [1, 1]} : vector<64x128xf32> to vector<8x128xf32>
    %cst_20 = arith.constant dense<0.000000e+00> : vector<8x128xf32>
    %49 = tpu.matmul %47, %1, %cst_20 {dimension_numbers = #tpu.dot_dimension_numbers<[1], [0], [0], [1], [0, 0, 1, 1], [], []>} : vector<8x32xf32>, vector<32x128xf32>, vector<8x128xf32> -> vector<8x128xf32>
    %50 = arith.addf %48, %49 : vector<8x128xf32>
    %51 = arith.mulf %50, %29 : vector<8x128xf32>
    %52 = math.tanh %51 : vector<8x128xf32>
    %53 = arith.mulf %52, %29 : vector<8x128xf32>
    %54 = arith.addf %53, %31 : vector<8x128xf32>
    %55 = vector.extract_strided_slice %54 {offsets = [0, 0], sizes = [8, 32], strides = [1, 1]} : vector<8x128xf32> to vector<8x32xf32>
    %56 = vector.extract_strided_slice %54 {offsets = [0, 32], sizes = [8, 32], strides = [1, 1]} : vector<8x128xf32> to vector<8x32xf32>
    %57 = vector.extract_strided_slice %54 {offsets = [0, 64], sizes = [8, 32], strides = [1, 1]} : vector<8x128xf32> to vector<8x32xf32>
    %58 = vector.extract_strided_slice %54 {offsets = [0, 96], sizes = [8, 32], strides = [1, 1]} : vector<8x128xf32> to vector<8x32xf32>
    %59 = arith.mulf %56, %45 : vector<8x32xf32>
    %60 = arith.mulf %55, %57 : vector<8x32xf32>
    %61 = arith.addf %59, %60 : vector<8x32xf32>
    %62 = math.tanh %61 : vector<8x32xf32>
    %63 = arith.mulf %58, %62 : vector<8x32xf32>
    %64 = vector.extract_strided_slice %20 {offsets = [16, 0], sizes = [8, 128], strides = [1, 1]} : vector<64x128xf32> to vector<8x128xf32>
    %cst_21 = arith.constant dense<0.000000e+00> : vector<8x128xf32>
    %65 = tpu.matmul %63, %1, %cst_21 {dimension_numbers = #tpu.dot_dimension_numbers<[1], [0], [0], [1], [0, 0, 1, 1], [], []>} : vector<8x32xf32>, vector<32x128xf32>, vector<8x128xf32> -> vector<8x128xf32>
    %66 = arith.addf %64, %65 : vector<8x128xf32>
    %67 = arith.mulf %66, %29 : vector<8x128xf32>
    %68 = math.tanh %67 : vector<8x128xf32>
    %69 = arith.mulf %68, %29 : vector<8x128xf32>
    %70 = arith.addf %69, %31 : vector<8x128xf32>
    %71 = vector.extract_strided_slice %70 {offsets = [0, 0], sizes = [8, 32], strides = [1, 1]} : vector<8x128xf32> to vector<8x32xf32>
    %72 = vector.extract_strided_slice %70 {offsets = [0, 32], sizes = [8, 32], strides = [1, 1]} : vector<8x128xf32> to vector<8x32xf32>
    %73 = vector.extract_strided_slice %70 {offsets = [0, 64], sizes = [8, 32], strides = [1, 1]} : vector<8x128xf32> to vector<8x32xf32>
    %74 = vector.extract_strided_slice %70 {offsets = [0, 96], sizes = [8, 32], strides = [1, 1]} : vector<8x128xf32> to vector<8x32xf32>
    %75 = arith.mulf %72, %61 : vector<8x32xf32>
    %76 = arith.mulf %71, %73 : vector<8x32xf32>
    %77 = arith.addf %75, %76 : vector<8x32xf32>
    %78 = math.tanh %77 : vector<8x32xf32>
    %79 = arith.mulf %74, %78 : vector<8x32xf32>
    %80 = vector.extract_strided_slice %20 {offsets = [24, 0], sizes = [8, 128], strides = [1, 1]} : vector<64x128xf32> to vector<8x128xf32>
    %cst_22 = arith.constant dense<0.000000e+00> : vector<8x128xf32>
    %81 = tpu.matmul %79, %1, %cst_22 {dimension_numbers = #tpu.dot_dimension_numbers<[1], [0], [0], [1], [0, 0, 1, 1], [], []>} : vector<8x32xf32>, vector<32x128xf32>, vector<8x128xf32> -> vector<8x128xf32>
    %82 = arith.addf %80, %81 : vector<8x128xf32>
    %83 = arith.mulf %82, %29 : vector<8x128xf32>
    %84 = math.tanh %83 : vector<8x128xf32>
    %85 = arith.mulf %84, %29 : vector<8x128xf32>
    %86 = arith.addf %85, %31 : vector<8x128xf32>
    %87 = vector.extract_strided_slice %86 {offsets = [0, 0], sizes = [8, 32], strides = [1, 1]} : vector<8x128xf32> to vector<8x32xf32>
    %88 = vector.extract_strided_slice %86 {offsets = [0, 32], sizes = [8, 32], strides = [1, 1]} : vector<8x128xf32> to vector<8x32xf32>
    %89 = vector.extract_strided_slice %86 {offsets = [0, 64], sizes = [8, 32], strides = [1, 1]} : vector<8x128xf32> to vector<8x32xf32>
    %90 = vector.extract_strided_slice %86 {offsets = [0, 96], sizes = [8, 32], strides = [1, 1]} : vector<8x128xf32> to vector<8x32xf32>
    %91 = arith.mulf %88, %77 : vector<8x32xf32>
    %92 = arith.mulf %87, %89 : vector<8x32xf32>
    %93 = arith.addf %91, %92 : vector<8x32xf32>
    %94 = math.tanh %93 : vector<8x32xf32>
    %95 = arith.mulf %90, %94 : vector<8x32xf32>
    %96 = vector.extract_strided_slice %20 {offsets = [32, 0], sizes = [8, 128], strides = [1, 1]} : vector<64x128xf32> to vector<8x128xf32>
    %cst_23 = arith.constant dense<0.000000e+00> : vector<8x128xf32>
    %97 = tpu.matmul %95, %1, %cst_23 {dimension_numbers = #tpu.dot_dimension_numbers<[1], [0], [0], [1], [0, 0, 1, 1], [], []>} : vector<8x32xf32>, vector<32x128xf32>, vector<8x128xf32> -> vector<8x128xf32>
    %98 = arith.addf %96, %97 : vector<8x128xf32>
    %99 = arith.mulf %98, %29 : vector<8x128xf32>
    %100 = math.tanh %99 : vector<8x128xf32>
    %101 = arith.mulf %100, %29 : vector<8x128xf32>
    %102 = arith.addf %101, %31 : vector<8x128xf32>
    %103 = vector.extract_strided_slice %102 {offsets = [0, 0], sizes = [8, 32], strides = [1, 1]} : vector<8x128xf32> to vector<8x32xf32>
    %104 = vector.extract_strided_slice %102 {offsets = [0, 32], sizes = [8, 32], strides = [1, 1]} : vector<8x128xf32> to vector<8x32xf32>
    %105 = vector.extract_strided_slice %102 {offsets = [0, 64], sizes = [8, 32], strides = [1, 1]} : vector<8x128xf32> to vector<8x32xf32>
    %106 = vector.extract_strided_slice %102 {offsets = [0, 96], sizes = [8, 32], strides = [1, 1]} : vector<8x128xf32> to vector<8x32xf32>
    %107 = arith.mulf %104, %93 : vector<8x32xf32>
    %108 = arith.mulf %103, %105 : vector<8x32xf32>
    %109 = arith.addf %107, %108 : vector<8x32xf32>
    %110 = math.tanh %109 : vector<8x32xf32>
    %111 = arith.mulf %106, %110 : vector<8x32xf32>
    %112 = vector.extract_strided_slice %20 {offsets = [40, 0], sizes = [8, 128], strides = [1, 1]} : vector<64x128xf32> to vector<8x128xf32>
    %cst_24 = arith.constant dense<0.000000e+00> : vector<8x128xf32>
    %113 = tpu.matmul %111, %1, %cst_24 {dimension_numbers = #tpu.dot_dimension_numbers<[1], [0], [0], [1], [0, 0, 1, 1], [], []>} : vector<8x32xf32>, vector<32x128xf32>, vector<8x128xf32> -> vector<8x128xf32>
    %114 = arith.addf %112, %113 : vector<8x128xf32>
    %115 = arith.mulf %114, %29 : vector<8x128xf32>
    %116 = math.tanh %115 : vector<8x128xf32>
    %117 = arith.mulf %116, %29 : vector<8x128xf32>
    %118 = arith.addf %117, %31 : vector<8x128xf32>
    %119 = vector.extract_strided_slice %118 {offsets = [0, 0], sizes = [8, 32], strides = [1, 1]} : vector<8x128xf32> to vector<8x32xf32>
    %120 = vector.extract_strided_slice %118 {offsets = [0, 32], sizes = [8, 32], strides = [1, 1]} : vector<8x128xf32> to vector<8x32xf32>
    %121 = vector.extract_strided_slice %118 {offsets = [0, 64], sizes = [8, 32], strides = [1, 1]} : vector<8x128xf32> to vector<8x32xf32>
    %122 = vector.extract_strided_slice %118 {offsets = [0, 96], sizes = [8, 32], strides = [1, 1]} : vector<8x128xf32> to vector<8x32xf32>
    %123 = arith.mulf %120, %109 : vector<8x32xf32>
    %124 = arith.mulf %119, %121 : vector<8x32xf32>
    %125 = arith.addf %123, %124 : vector<8x32xf32>
    %126 = math.tanh %125 : vector<8x32xf32>
    %127 = arith.mulf %122, %126 : vector<8x32xf32>
    %128 = vector.extract_strided_slice %20 {offsets = [48, 0], sizes = [8, 128], strides = [1, 1]} : vector<64x128xf32> to vector<8x128xf32>
    %cst_25 = arith.constant dense<0.000000e+00> : vector<8x128xf32>
    %129 = tpu.matmul %127, %1, %cst_25 {dimension_numbers = #tpu.dot_dimension_numbers<[1], [0], [0], [1], [0, 0, 1, 1], [], []>} : vector<8x32xf32>, vector<32x128xf32>, vector<8x128xf32> -> vector<8x128xf32>
    %130 = arith.addf %128, %129 : vector<8x128xf32>
    %131 = arith.mulf %130, %29 : vector<8x128xf32>
    %132 = math.tanh %131 : vector<8x128xf32>
    %133 = arith.mulf %132, %29 : vector<8x128xf32>
    %134 = arith.addf %133, %31 : vector<8x128xf32>
    %135 = vector.extract_strided_slice %134 {offsets = [0, 0], sizes = [8, 32], strides = [1, 1]} : vector<8x128xf32> to vector<8x32xf32>
    %136 = vector.extract_strided_slice %134 {offsets = [0, 32], sizes = [8, 32], strides = [1, 1]} : vector<8x128xf32> to vector<8x32xf32>
    %137 = vector.extract_strided_slice %134 {offsets = [0, 64], sizes = [8, 32], strides = [1, 1]} : vector<8x128xf32> to vector<8x32xf32>
    %138 = vector.extract_strided_slice %134 {offsets = [0, 96], sizes = [8, 32], strides = [1, 1]} : vector<8x128xf32> to vector<8x32xf32>
    %139 = arith.mulf %136, %125 : vector<8x32xf32>
    %140 = arith.mulf %135, %137 : vector<8x32xf32>
    %141 = arith.addf %139, %140 : vector<8x32xf32>
    %142 = math.tanh %141 : vector<8x32xf32>
    %143 = arith.mulf %138, %142 : vector<8x32xf32>
    %144 = vector.extract_strided_slice %20 {offsets = [56, 0], sizes = [8, 128], strides = [1, 1]} : vector<64x128xf32> to vector<8x128xf32>
    %cst_26 = arith.constant dense<0.000000e+00> : vector<8x128xf32>
    %145 = tpu.matmul %143, %1, %cst_26 {dimension_numbers = #tpu.dot_dimension_numbers<[1], [0], [0], [1], [0, 0, 1, 1], [], []>} : vector<8x32xf32>, vector<32x128xf32>, vector<8x128xf32> -> vector<8x128xf32>
    %146 = arith.addf %144, %145 : vector<8x128xf32>
    %147 = arith.mulf %146, %29 : vector<8x128xf32>
    %148 = math.tanh %147 : vector<8x128xf32>
    %149 = arith.mulf %148, %29 : vector<8x128xf32>
    %150 = arith.addf %149, %31 : vector<8x128xf32>
    %151 = vector.extract_strided_slice %150 {offsets = [0, 0], sizes = [8, 32], strides = [1, 1]} : vector<8x128xf32> to vector<8x32xf32>
    %152 = vector.extract_strided_slice %150 {offsets = [0, 32], sizes = [8, 32], strides = [1, 1]} : vector<8x128xf32> to vector<8x32xf32>
    %153 = vector.extract_strided_slice %150 {offsets = [0, 64], sizes = [8, 32], strides = [1, 1]} : vector<8x128xf32> to vector<8x32xf32>
    %154 = vector.extract_strided_slice %150 {offsets = [0, 96], sizes = [8, 32], strides = [1, 1]} : vector<8x128xf32> to vector<8x32xf32>
    %155 = arith.mulf %152, %141 : vector<8x32xf32>
    %156 = arith.mulf %151, %153 : vector<8x32xf32>
    %157 = arith.addf %155, %156 : vector<8x32xf32>
    %158 = math.tanh %157 : vector<8x32xf32>
    %159 = arith.mulf %154, %158 : vector<8x32xf32>
    %160 = tpu.concatenate %16, %159 in 1 : vector<8x32xf32>, vector<8x32xf32> -> vector<8x64xf32>
    %cst_27 = arith.constant dense<0.000000e+00> : vector<8x32xf32>
    %161 = tpu.matmul %160, %5, %cst_27 {dimension_numbers = #tpu.dot_dimension_numbers<[1], [0], [0], [1], [0, 0, 1, 1], [], []>} : vector<8x64xf32>, vector<64x32xf32>, vector<8x32xf32> -> vector<8x32xf32>
    %162 = vector.broadcast %8 : vector<1x32xf32> to vector<8x32xf32>
    %163 = arith.addf %161, %162 : vector<8x32xf32>
    %cst_28 = arith.constant 0.000000e+00 : f32
    %164 = vector.broadcast %cst_28 : f32 to vector<8x32xf32>
    %165 = arith.maximumf %163, %164 : vector<8x32xf32>
    %cst_29 = arith.constant 0.000000e+00 : f32
    %166 = vector.broadcast %cst_29 : f32 to vector<8x64xf32>
    %167 = tpu.concatenate %165, %16, %166 in 1 : vector<8x32xf32>, vector<8x32xf32>, vector<8x64xf32> -> vector<8x128xf32>
    %c0_30 = arith.constant 0 : index
    %c0_31 = arith.constant 0 : index
    %168 = vector.load %arg3[%c0_30, %c0_31] : memref<8x128xf32, #tpu.memory_space<vmem>>, vector<8x128xf32>
    tpu.vector_store %arg3[%c0_30, %c0_31], %167 {strides = array<i32>} : memref<8x128xf32, #tpu.memory_space<vmem>>, vector<8x128xf32>,
    return
  }
}

</mosaic_0001>

<llo_original>
// kernel: lstm_dec_forward.1
$region0: #{lstm_dec_forward.1}
  #allocation0 [shape = 'u32[]', space=smem, size = 0x4, offset = 0x4, fixed_abs, tag = 'smem constant byte address 0x4 - core index']
  #allocation1 [shape = 'u32[144,128]{1,0:T(1,128)}', space=vmem, size = 0x12000, scoped, tag = 'internal scratch']
  %s0 = inlined_call_operand.vmem [shape: f32[64,16], index: 0, kind: input, shape index: {}]
  %s1 = inlined_call_operand.vmem [shape: f32[16,32], index: 1, kind: input, shape index: {}]
  %s2 = inlined_call_operand.hbm [shape: f32[208,128], index: 2, kind: input, shape index: {}]
  %s3 = inlined_call_operand.vmem [shape: f32[8,128], index: 3, kind: output, shape index: {}]
  %s4 = sld [smem:[#allocation0]]
  $region26: #{lstm_dec_forward.1} parent=0
    _
  %s6 = ssub.s32 1, %s4
  %s7 = scalar_select 0, %s6, %s4
  $region1: #{lstm_dec_forward.1} parent=0
    #allocation2 [shape = 'u8[106496]{0}', space=vmem, size = 0x1a000, scoped, tag = 'input window, operand 2, single buffered']
    #allocation3 [shape = 's32[1]{0}', space=sflag, size = 0x4, scoped, tag = 'scoped memory for lstm_dec_forward.1']
    %8 = vsyncpa [#allocation3], 0
    // Predicated region
    $region2: #{lstm_dec_forward.1} parent=1 // pred_check
      _
    $region3: #{lstm_dec_forward.1} parent=1 // pred_check_branch
      %10 = sbr.rel (0) target = $region5
    $region4: #{lstm_dec_forward.1} parent=1 // pred_region
      _
    $region5: #{lstm_dec_forward.1} parent=1 // pred_fallthru
      _
    // Predicated region
    $region6: #{lstm_dec_forward.1} parent=1 // pred_check
      _
    $region7: #{lstm_dec_forward.1} parent=1 // pred_check_branch
      %12 = sbr.rel (0) target = $region9
    $region8: #{lstm_dec_forward.1} parent=1 // pred_region
      _
    $region9: #{lstm_dec_forward.1} parent=1 // pred_fallthru
      _
    // Predicated region
    $region10: #{lstm_dec_forward.1} parent=1 // pred_check
      _
    $region11: #{lstm_dec_forward.1} parent=1 // pred_check_branch
      %14 = sbr.rel (0) target = $region13
    $region12: #{lstm_dec_forward.1} parent=1 // pred_region
      %s16 = ssub.s32 3328, 3328
      %17 = vsyncadd [#allocation3], %s16
      %s18 = sshll.u32 [#allocation2], 4
      %s19 = int_to_ptr.vmem [resolvable:$true] %s18
      %24 = dma.hbm_to_vmem [thread:$0]  %s2, 3328, %s19, [#allocation3], 128, 128, 8
    $region13: #{lstm_dec_forward.1} parent=1 // pred_fallthru
      _
    // Predicated region
    $region14: #{lstm_dec_forward.1} parent=1 // pred_check
      _
    $region15: #{lstm_dec_forward.1} parent=1 // pred_check_branch
      %26 = sbr.rel (0) target = $region17
    $region16: #{lstm_dec_forward.1} parent=1 // pred_region
      %27 = dma.done [#allocation3], 3328
    $region17: #{lstm_dec_forward.1} parent=1 // pred_fallthru
      _
    %v28 = vld [vmem:[#allocation2] sm:$0xff]
    %v29 = vld [vmem:[#allocation2 + $0x8] sm:$0xff]
    %v30 = vld [vmem:[#allocation2 + $0x10] sm:$0xff]
    %v31 = vld [vmem:[#allocation2 + $0x18] sm:$0xff]
    %v32 = vld [vmem:[#allocation2 + $0x20] sm:$0xff]
    %v33 = vld [vmem:[#allocation2 + $0x28] sm:$0xff]
    %v34 = vld [vmem:[#allocation2 + $0x30] sm:$0x1]
    %v35 = vld [vmem:[#allocation2 + $0x38] sm:$0xff]
    %v36 = vld [vmem:[#allocation2 + $0x40] sm:$0xff]
    %v37 = vld [vmem:[#allocation2 + $0x48] sm:$0xff]
    %v38 = vld [vmem:[#allocation2 + $0x50] sm:$0xff]
    %v39 = vld [vmem:[#allocation2 + $0x58] sm:$0xff]
    %v40 = vld [vmem:[#allocation2 + $0x60] sm:$0xff]
    %v41 = vld [vmem:[#allocation2 + $0x68] sm:$0xff]
    %v42 = vld [vmem:[#allocation2 + $0x70] sm:$0xff]
    %v43 = vld [vmem:[#allocation2 + $0x78] sm:$0xff]
    %v44 = vld [vmem:[#allocation2 + $0x80] sm:$0xff]
    %v45 = vld [vmem:[#allocation2 + $0x88] sm:$0xff]
    %v46 = vld [vmem:[#allocation2 + $0x90] sm:$0xff]
    %v47 = vld [vmem:[#allocation2 + $0x98] sm:$0xff]
    %v48 = vld [vmem:[#allocation2 + $0xa0] sm:$0xff]
    %v49 = vld [vmem:[#allocation2 + $0xa8] sm:$0xff]
    %v50 = vld [vmem:[#allocation2 + $0xb0] sm:$0xff]
    %v51 = vld [vmem:[#allocation2 + $0xb8] sm:$0x1]
    %v52 = vld [vmem:[#allocation2 + $0xc0] sm:$0x1]
    %v53 = vld [vmem:[#allocation2 + $0xc8] sm:$0x1]
    %v54 = vld [vmem:[%s1] sm:$0xff]
    %v55 = vld [vmem:[%s1 + $0x8] sm:$0xff]
    %v56 = vlaneseq
    %v57 = vshrl.u32 %v56, 7
    %v58 = vsub.s32 0, %v57
    %v59 = vrot.slane %v51, %v58
    %vm60 = vcmask 261120
    %v62 = vsel %vm60, %v54, 0
    %64 = vmatprep.subr.mxu0 0.0
    %65 = vmatpush1.msra.mxu0 %v35
    %66 = vmatprep.subr.mxu0 0.0
    %67 = vmatpush1.msra.mxu0 %v36
    %68 = vmatprep.subr.mxu0 0.0
    %69 = vmatpush1.msra.mxu0 %v37
    %70 = vmatprep.subr.mxu0 0.0
    %71 = vmatpush1.msra.mxu0 %v38
    %72 = vmatprep.subr.mxu0 0.0
    %73 = vmatpush1.msra.mxu0 0.0
    %74 = vmatprep.subr.mxu0 0.0
    %75 = vmatpush1.msra.mxu0 0.0
    %76 = vmatprep.subr.mxu0 0.0
    %77 = vmatpush1.msra.mxu0 0.0
    %78 = vmatprep.subr.mxu0 0.0
    %79 = vmatpush1.msra.mxu0 0.0
    %80 = vmatprep.subr.mxu0 0.0
    %81 = vmatpush1.msra.mxu0 0.0
    %82 = vmatprep.subr.mxu0 0.0
    %83 = vmatpush1.msra.mxu0 0.0
    %84 = vmatprep.subr.mxu0 0.0
    %85 = vmatpush1.msra.mxu0 0.0
    %86 = vmatprep.subr.mxu0 0.0
    %87 = vmatpush1.msra.mxu0 0.0
    %88 = vmatprep.subr.mxu0 0.0
    %89 = vmatpush1.msra.mxu0 0.0
    %90 = vmatprep.subr.mxu0 0.0
    %91 = vmatpush1.msra.mxu0 0.0
    %92 = vmatprep.subr.mxu0 0.0
    %93 = vmatpush1.msra.mxu0 0.0
    %94 = vmatprep.subr.mxu0 0.0
    %95 = vmatpush1.msra.mxu0 0.0
    %96 = vmatprep.subr.mxu0 0.0
    %97 = vmatpush1.msra.mxu0 0.0
    %98 = vmatprep.subr.mxu0 0.0
    %99 = vmatpush1.msra.mxu0 0.0
    %100 = vmatprep.subr.mxu0 0.0
    %101 = vmatpush1.msra.mxu0 0.0
    %102 = vmatprep.subr.mxu0 0.0
    %103 = vmatpush1.msra.mxu0 0.0
    %104 = vmatprep.subr.mxu0 0.0
    %105 = vmatpush1.msra.mxu0 0.0
    %106 = vmatprep.subr.mxu0 0.0
    %107 = vmatpush1.msra.mxu0 0.0
    %108 = vmatprep.subr.mxu0 0.0
    %109 = vmatpush1.msra.mxu0 0.0
    %110 = vmatprep.subr.mxu0 0.0
    %111 = vmatpush1.msra.mxu0 0.0
    %112 = vmatprep.subr.mxu0 0.0
    %113 = vmatpush1.msra.mxu0 0.0
    %114 = vmatprep.subr.mxu0 0.0
    %115 = vmatpush1.msra.mxu0 0.0
    %116 = vmatprep.subr.mxu0 0.0
    %117 = vmatpush1.msra.mxu0 0.0
    %118 = vmatprep.subr.mxu0 0.0
    %119 = vmatpush1.msra.mxu0 0.0
    %120 = vmatprep.subr.mxu0 0.0
    %121 = vmatpush1.msra.mxu0 0.0
    %122 = vmatprep.subr.mxu0 0.0
    %123 = vmatpush1.msra.mxu0 0.0
    %124 = vmatprep.subr.mxu0 0.0
    %125 = vmatpush1.msra.mxu0 0.0
    %126 = vmatprep.subr.mxu0 0.0
    %127 = vmatpush1.msra.mxu0 0.0
    %128 = vmatprep.mubr.f32.mxu0 0.0
    %129 = vmatmul.mubr.f32.gmra.mrb[0].mxu0 %v62
    %v130 = vpop.f32.mrb[0].mxu0
    %v131 = vadd.f32 %v59, %v130
    %v132 = vpop.f32.mrb[0].mxu0
    %133 = vdwg.mxu0
    %v134 = vlaneseq
    %v135 = vshrl.u32 %v134, 7
    %v136 = vsub.s32 0, %v135
    %v137 = vrot.slane %v52, %v136
    %v139 = vsel %vm60, %v131, 0
    %141 = vmatprep.subr.mxu0 0.0
    %142 = vmatpush1.msra.mxu0 %v39
    %143 = vmatprep.subr.mxu0 0.0
    %144 = vmatpush1.msra.mxu0 %v40
    %145 = vmatprep.subr.mxu0 0.0
    %146 = vmatpush1.msra.mxu0 %v41
    %147 = vmatprep.subr.mxu0 0.0
    %148 = vmatpush1.msra.mxu0 %v42
    %149 = vmatprep.subr.mxu0 0.0
    %150 = vmatpush1.msra.mxu0 0.0
    %151 = vmatprep.subr.mxu0 0.0
    %152 = vmatpush1.msra.mxu0 0.0
    %153 = vmatprep.subr.mxu0 0.0
    %154 = vmatpush1.msra.mxu0 0.0
    %155 = vmatprep.subr.mxu0 0.0
    %156 = vmatpush1.msra.mxu0 0.0
    %157 = vmatprep.subr.mxu0 0.0
    %158 = vmatpush1.msra.mxu0 0.0
    %159 = vmatprep.subr.mxu0 0.0
    %160 = vmatpush1.msra.mxu0 0.0
    %161 = vmatprep.subr.mxu0 0.0
    %162 = vmatpush1.msra.mxu0 0.0
    %163 = vmatprep.subr.mxu0 0.0
    %164 = vmatpush1.msra.mxu0 0.0
    %165 = vmatprep.subr.mxu0 0.0
    %166 = vmatpush1.msra.mxu0 0.0
    %167 = vmatprep.subr.mxu0 0.0
    %168 = vmatpush1.msra.mxu0 0.0
    %169 = vmatprep.subr.mxu0 0.0
    %170 = vmatpush1.msra.mxu0 0.0
    %171 = vmatprep.subr.mxu0 0.0
    %172 = vmatpush1.msra.mxu0 0.0
    %173 = vmatprep.subr.mxu0 0.0
    %174 = vmatpush1.msra.mxu0 0.0
    %175 = vmatprep.subr.mxu0 0.0
    %176 = vmatpush1.msra.mxu0 0.0
    %177 = vmatprep.subr.mxu0 0.0
    %178 = vmatpush1.msra.mxu0 0.0
    %179 = vmatprep.subr.mxu0 0.0
    %180 = vmatpush1.msra.mxu0 0.0
    %181 = vmatprep.subr.mxu0 0.0
    %182 = vmatpush1.msra.mxu0 0.0
    %183 = vmatprep.subr.mxu0 0.0
    %184 = vmatpush1.msra.mxu0 0.0
    %185 = vmatprep.subr.mxu0 0.0
    %186 = vmatpush1.msra.mxu0 0.0
    %187 = vmatprep.subr.mxu0 0.0
    %188 = vmatpush1.msra.mxu0 0.0
    %189 = vmatprep.subr.mxu0 0.0
    %190 = vmatpush1.msra.mxu0 0.0
    %191 = vmatprep.subr.mxu0 0.0
    %192 = vmatpush1.msra.mxu0 0.0
    %193 = vmatprep.subr.mxu0 0.0
    %194 = vmatpush1.msra.mxu0 0.0
    %195 = vmatprep.subr.mxu0 0.0
    %196 = vmatpush1.msra.mxu0 0.0
    %197 = vmatprep.subr.mxu0 0.0
    %198 = vmatpush1.msra.mxu0 0.0
    %199 = vmatprep.subr.mxu0 0.0
    %200 = vmatpush1.msra.mxu0 0.0
    %201 = vmatprep.subr.mxu0 0.0
    %202 = vmatpush1.msra.mxu0 0.0
    %203 = vmatprep.subr.mxu0 0.0
    %204 = vmatpush1.msra.mxu0 0.0
    %205 = vmatprep.mubr.f32.mxu0 0.0
    %206 = vmatmul.mubr.f32.gmra.mrb[0].mxu0 %v139
    %v207 = vpop.f32.mrb[0].mxu0
    %v208 = vadd.f32 %v137, %v207
    %v209 = vpop.f32.mrb[0].mxu0
    %210 = vdwg.mxu0
    %v211 = vld [vmem:[%s0] sm:$0xff]
    %v212 = vld [vmem:[%s0 + $0x8] sm:$0xff]
    %v213 = vld [vmem:[%s0 + $0x10] sm:$0xff]
    %v214 = vld [vmem:[%s0 + $0x18] sm:$0xff]
    %v215 = vld [vmem:[%s0 + $0x20] sm:$0xff]
    %v216 = vld [vmem:[%s0 + $0x28] sm:$0xff]
    %v217 = vld [vmem:[%s0 + $0x30] sm:$0xff]
    %v218 = vld [vmem:[%s0 + $0x38] sm:$0xff]
    %v219 = vlaneseq
    %v220 = vshrl.u32 %v219, 7
    %v221 = vsub.s32 0, %v220
    %v222 = vrot.slane %v34, %v221
    %vm223 = vcmask 130048
    %v225 = vsel %vm223, %v211, 0
    %v228 = vsel %vm223, %v212, 0
    %v231 = vsel %vm223, %v213, 0
    %v234 = vsel %vm223, %v214, 0
    %v237 = vsel %vm223, %v215, 0
    %v240 = vsel %vm223, %v216, 0
    %v243 = vsel %vm223, %v217, 0
    %v246 = vsel %vm223, %v218, 0
    %248 = vmatprep.subr.mxu0 0.0
    %249 = vmatpush1.msra.mxu0 %v28
    %250 = vmatprep.subr.mxu0 0.0
    %251 = vmatpush1.msra.mxu0 %v29
    %252 = vmatprep.subr.mxu0 0.0
    %253 = vmatpush1.msra.mxu0 0.0
    %254 = vmatprep.subr.mxu0 0.0
    %255 = vmatpush1.msra.mxu0 0.0
    %256 = vmatprep.subr.mxu0 0.0
    %257 = vmatpush1.msra.mxu0 0.0
    %258 = vmatprep.subr.mxu0 0.0
    %259 = vmatpush1.msra.mxu0 0.0
    %260 = vmatprep.subr.mxu0 0.0
    %261 = vmatpush1.msra.mxu0 0.0
    %262 = vmatprep.subr.mxu0 0.0
    %263 = vmatpush1.msra.mxu0 0.0
    %264 = vmatprep.subr.mxu0 0.0
    %265 = vmatpush1.msra.mxu0 0.0
    %266 = vmatprep.subr.mxu0 0.0
    %267 = vmatpush1.msra.mxu0 0.0
    %268 = vmatprep.subr.mxu0 0.0
    %269 = vmatpush1.msra.mxu0 0.0
    %270 = vmatprep.subr.mxu0 0.0
    %271 = vmatpush1.msra.mxu0 0.0
    %272 = vmatprep.subr.mxu0 0.0
    %273 = vmatpush1.msra.mxu0 0.0
    %274 = vmatprep.subr.mxu0 0.0
    %275 = vmatpush1.msra.mxu0 0.0
    %276 = vmatprep.subr.mxu0 0.0
    %277 = vmatpush1.msra.mxu0 0.0
    %278 = vmatprep.subr.mxu0 0.0
    %279 = vmatpush1.msra.mxu0 0.0
    %280 = vmatprep.subr.mxu0 0.0
    %281 = vmatpush1.msra.mxu0 0.0
    %282 = vmatprep.subr.mxu0 0.0
    %283 = vmatpush1.msra.mxu0 0.0
    %284 = vmatprep.subr.mxu0 0.0
    %285 = vmatpush1.msra.mxu0 0.0
    %286 = vmatprep.subr.mxu0 0.0
    %287 = vmatpush1.msra.mxu0 0.0
    %288 = vmatprep.subr.mxu0 0.0
    %289 = vmatpush1.msra.mxu0 0.0
    %290 = vmatprep.subr.mxu0 0.0
    %291 = vmatpush1.msra.mxu0 0.0
    %292 = vmatprep.subr.mxu0 0.0
    %293 = vmatpush1.msra.mxu0 0.0
    %294 = vmatprep.subr.mxu0 0.0
    %295 = vmatpush1.msra.mxu0 0.0
    %296 = vmatprep.subr.mxu0 0.0
    %297 = vmatpush1.msra.mxu0 0.0
    %298 = vmatprep.subr.mxu0 0.0
    %299 = vmatpush1.msra.mxu0 0.0
    %300 = vmatprep.subr.mxu0 0.0
    %301 = vmatpush1.msra.mxu0 0.0
    %302 = vmatprep.subr.mxu0 0.0
    %303 = vmatpush1.msra.mxu0 0.0
    %304 = vmatprep.subr.mxu0 0.0
    %305 = vmatpush1.msra.mxu0 0.0
    %306 = vmatprep.subr.mxu0 0.0
    %307 = vmatpush1.msra.mxu0 0.0
    %308 = vmatprep.subr.mxu0 0.0
    %309 = vmatpush1.msra.mxu0 0.0
    %310 = vmatprep.subr.mxu0 0.0
    %311 = vmatpush1.msra.mxu0 0.0
    %312 = vmatprep.mubr.f32.mxu0 0.0
    %313 = vmatmul.mubr.f32.gmra.mrb[0].mxu0 %v225
    %v314 = vpop.f32.mrb[0].mxu0
    %v315 = vadd.f32 %v222, %v314
    %v316 = vpop.f32.mrb[0].mxu0
    %317 = vmatprep.mubr.f32.mxu0 0.0
    %318 = vmatmul.mubr.f32.gmra.mrb[0].mxu0 %v228
    %v319 = vpop.f32.mrb[0].mxu0
    %v320 = vadd.f32 %v222, %v319
    %v321 = vpop.f32.mrb[0].mxu0
    %322 = vmatprep.mubr.f32.mxu0 0.0
    %323 = vmatmul.mubr.f32.gmra.mrb[0].mxu0 %v231
    %v324 = vpop.f32.mrb[0].mxu0
    %v325 = vadd.f32 %v222, %v324
    %v326 = vpop.f32.mrb[0].mxu0
    %327 = vmatprep.mubr.f32.mxu0 0.0
    %328 = vmatmul.mubr.f32.gmra.mrb[0].mxu0 %v234
    %v329 = vpop.f32.mrb[0].mxu0
    %v330 = vadd.f32 %v222, %v329
    %v331 = vpop.f32.mrb[0].mxu0
    %332 = vmatprep.mubr.f32.mxu0 0.0
    %333 = vmatmul.mubr.f32.gmra.mrb[0].mxu0 %v237
    %v334 = vpop.f32.mrb[0].mxu0
    %v335 = vadd.f32 %v222, %v334
    %v336 = vpop.f32.mrb[0].mxu0
    %337 = vmatprep.mubr.f32.mxu0 0.0
    %338 = vmatmul.mubr.f32.gmra.mrb[0].mxu0 %v240
    %v339 = vpop.f32.mrb[0].mxu0
    %v340 = vadd.f32 %v222, %v339
    %v341 = vpop.f32.mrb[0].mxu0
    %342 = vmatprep.mubr.f32.mxu0 0.0
    %343 = vmatmul.mubr.f32.gmra.mrb[0].mxu0 %v243
    %v344 = vpop.f32.mrb[0].mxu0
    %v345 = vadd.f32 %v222, %v344
    %v346 = vpop.f32.mrb[0].mxu0
    %347 = vmatprep.mubr.f32.mxu0 0.0
    %348 = vmatmul.mubr.f32.gmra.mrb[0].mxu0 %v246
    %v349 = vpop.f32.mrb[0].mxu0
    %v350 = vadd.f32 %v222, %v349
    %v351 = vpop.f32.mrb[0].mxu0
    %352 = vdwg.mxu0
    %v353 = vlaneseq
    %v354 = vand.u32 %v353, 127
    %vm355 = vcmp.ge.s32.totalorder %v354, 64
    %vm356 = vcmp.lt.s32.totalorder %v354, 96
    %vm357 = vmand %vm355, %vm356
    %v358 = vsel %vm357, 1.0, 0.5
    %v359 = vsub.f32 1.0, %v358
    %360 = vmatprep.subr.mxu0 0.0
    %361 = vmatpush1.msra.mxu0 %v30
    %362 = vmatprep.subr.mxu0 0.0
    %363 = vmatpush1.msra.mxu0 %v31
    %364 = vmatprep.subr.mxu0 0.0
    %365 = vmatpush1.msra.mxu0 %v32
    %366 = vmatprep.subr.mxu0 0.0
    %367 = vmatpush1.msra.mxu0 %v33
    %368 = vmatprep.subr.mxu0 0.0
    %369 = vmatpush1.msra.mxu0 0.0
    %370 = vmatprep.subr.mxu0 0.0
    %371 = vmatpush1.msra.mxu0 0.0
    %372 = vmatprep.subr.mxu0 0.0
    %373 = vmatpush1.msra.mxu0 0.0
    %374 = vmatprep.subr.mxu0 0.0
    %375 = vmatpush1.msra.mxu0 0.0
    %376 = vmatprep.subr.mxu0 0.0
    %377 = vmatpush1.msra.mxu0 0.0
    %378 = vmatprep.subr.mxu0 0.0
    %379 = vmatpush1.msra.mxu0 0.0
    %380 = vmatprep.subr.mxu0 0.0
    %381 = vmatpush1.msra.mxu0 0.0
    %382 = vmatprep.subr.mxu0 0.0
    %383 = vmatpush1.msra.mxu0 0.0
    %384 = vmatprep.subr.mxu0 0.0
    %385 = vmatpush1.msra.mxu0 0.0
    %386 = vmatprep.subr.mxu0 0.0
    %387 = vmatpush1.msra.mxu0 0.0
    %388 = vmatprep.subr.mxu0 0.0
    %389 = vmatpush1.msra.mxu0 0.0
    %390 = vmatprep.subr.mxu0 0.0
    %391 = vmatpush1.msra.mxu0 0.0
    %392 = vmatprep.subr.mxu0 0.0
    %393 = vmatpush1.msra.mxu0 0.0
    %394 = vmatprep.subr.mxu0 0.0
    %395 = vmatpush1.msra.mxu0 0.0
    %396 = vmatprep.subr.mxu0 0.0
    %397 = vmatpush1.msra.mxu0 0.0
    %398 = vmatprep.subr.mxu0 0.0
    %399 = vmatpush1.msra.mxu0 0.0
    %400 = vmatprep.subr.mxu0 0.0
    %401 = vmatpush1.msra.mxu0 0.0
    %402 = vmatprep.subr.mxu0 0.0
    %403 = vmatpush1.msra.mxu0 0.0
    %404 = vmatprep.subr.mxu0 0.0
    %405 = vmatpush1.msra.mxu0 0.0
    %406 = vmatprep.subr.mxu0 0.0
    %407 = vmatpush1.msra.mxu0 0.0
    %408 = vmatprep.subr.mxu0 0.0
    %409 = vmatpush1.msra.mxu0 0.0
    %410 = vmatprep.subr.mxu0 0.0
    %411 = vmatpush1.msra.mxu0 0.0
    %412 = vmatprep.subr.mxu0 0.0
    %413 = vmatpush1.msra.mxu0 0.0
    %414 = vmatprep.subr.mxu0 0.0
    %415 = vmatpush1.msra.mxu0 0.0
    %416 = vmatprep.subr.mxu0 0.0
    %417 = vmatpush1.msra.mxu0 0.0
    %418 = vmatprep.subr.mxu0 0.0
    %419 = vmatpush1.msra.mxu0 0.0
    %420 = vmatprep.subr.mxu0 0.0
    %421 = vmatpush1.msra.mxu0 0.0
    %422 = vmatprep.subr.mxu0 0.0
    %423 = vmatpush1.msra.mxu0 0.0
    %424 = vmatprep.mubr.f32.mxu0 0.0
    %425 = vmatmul.mubr.f32.gmra.mrb[0].mxu0 %v62
    %v426 = vpop.f32.mrb[0].mxu0
    %v427 = vadd.f32 0.0, %v426
    %v428 = vpop.f32.mrb[0].mxu0
    %429 = vdwg.mxu0
    %v430 = vadd.f32 %v315, %v427
    %v431 = vmul.f32 %v430, %v358
    %v432 = vtanh.pop %v431
    %v433 = vmul.f32 %v432, %v358
    %v434 = vadd.f32 %v433, %v359
    %436 = vrot.lane.b32.xlu0 %v55, 32
    %v437 = vpop.permute.xlu0 %436
    %v439 = vmul.f32 %v434, %v437
    %441 = vrot.lane.b32.xlu0 %v434, 64
    %v442 = vpop.permute.xlu0 %441
    %v444 = vmul.f32 %v434, %v442
    %446 = vrot.lane.b32.xlu0 %v444, 32
    %v447 = vpop.permute.xlu0 %446
    %v449 = vadd.f32 %v439, %v447
    %v450 = vtanh.pop %v449
    %452 = vrot.lane.b32.xlu0 %v450, 64
    %v453 = vpop.permute.xlu0 %452
    %v455 = vmul.f32 %v434, %v453
    %457 = vrot.lane.b32.xlu0 %v455, 32
    %v458 = vpop.permute.xlu0 %457
    %v459 = vsel %vm60, %v458, 0
    %461 = vmatprep.subr.mxu0 0.0
    %462 = vmatpush1.msra.mxu0 %v30
    %463 = vmatprep.subr.mxu0 0.0
    %464 = vmatpush1.msra.mxu0 %v31
    %465 = vmatprep.subr.mxu0 0.0
    %466 = vmatpush1.msra.mxu0 %v32
    %467 = vmatprep.subr.mxu0 0.0
    %468 = vmatpush1.msra.mxu0 %v33
    %469 = vmatprep.subr.mxu0 0.0
    %470 = vmatpush1.msra.mxu0 0.0
    %471 = vmatprep.subr.mxu0 0.0
    %472 = vmatpush1.msra.mxu0 0.0
    %473 = vmatprep.subr.mxu0 0.0
    %474 = vmatpush1.msra.mxu0 0.0
    %475 = vmatprep.subr.mxu0 0.0
    %476 = vmatpush1.msra.mxu0 0.0
    %477 = vmatprep.subr.mxu0 0.0
    %478 = vmatpush1.msra.mxu0 0.0
    %479 = vmatprep.subr.mxu0 0.0
    %480 = vmatpush1.msra.mxu0 0.0
    %481 = vmatprep.subr.mxu0 0.0
    %482 = vmatpush1.msra.mxu0 0.0
    %483 = vmatprep.subr.mxu0 0.0
    %484 = vmatpush1.msra.mxu0 0.0
    %485 = vmatprep.subr.mxu0 0.0
    %486 = vmatpush1.msra.mxu0 0.0
    %487 = vmatprep.subr.mxu0 0.0
    %488 = vmatpush1.msra.mxu0 0.0
    %489 = vmatprep.subr.mxu0 0.0
    %490 = vmatpush1.msra.mxu0 0.0
    %491 = vmatprep.subr.mxu0 0.0
    %492 = vmatpush1.msra.mxu0 0.0
    %493 = vmatprep.subr.mxu0 0.0
    %494 = vmatpush1.msra.mxu0 0.0
    %495 = vmatprep.subr.mxu0 0.0
    %496 = vmatpush1.msra.mxu0 0.0
    %497 = vmatprep.subr.mxu0 0.0
    %498 = vmatpush1.msra.mxu0 0.0
    %499 = vmatprep.subr.mxu0 0.0
    %500 = vmatpush1.msra.mxu0 0.0
    %501 = vmatprep.subr.mxu0 0.0
    %502 = vmatpush1.msra.mxu0 0.0
    %503 = vmatprep.subr.mxu0 0.0
    %504 = vmatpush1.msra.mxu0 0.0
    %505 = vmatprep.subr.mxu0 0.0
    %506 = vmatpush1.msra.mxu0 0.0
    %507 = vmatprep.subr.mxu0 0.0
    %508 = vmatpush1.msra.mxu0 0.0
    %509 = vmatprep.subr.mxu0 0.0
    %510 = vmatpush1.msra.mxu0 0.0
    %511 = vmatprep.subr.mxu0 0.0
    %512 = vmatpush1.msra.mxu0 0.0
    %513 = vmatprep.subr.mxu0 0.0
    %514 = vmatpush1.msra.mxu0 0.0
    %515 = vmatprep.subr.mxu0 0.0
    %516 = vmatpush1.msra.mxu0 0.0
    %517 = vmatprep.subr.mxu0 0.0
    %518 = vmatpush1.msra.mxu0 0.0
    %519 = vmatprep.subr.mxu0 0.0
    %520 = vmatpush1.msra.mxu0 0.0
    %521 = vmatprep.subr.mxu0 0.0
    %522 = vmatpush1.msra.mxu0 0.0
    %523 = vmatprep.subr.mxu0 0.0
    %524 = vmatpush1.msra.mxu0 0.0
    %525 = vmatprep.mubr.f32.mxu0 0.0
    %526 = vmatmul.mubr.f32.gmra.mrb[0].mxu0 %v459
    %v527 = vpop.f32.mrb[0].mxu0
    %v528 = vadd.f32 0.0, %v527
    %v529 = vpop.f32.mrb[0].mxu0
    %530 = vdwg.mxu0
    %v531 = vadd.f32 %v320, %v528
    %v532 = vmul.f32 %v531, %v358
    %v533 = vtanh.pop %v532
    %v534 = vmul.f32 %v533, %v358
    %v535 = vadd.f32 %v534, %v359
    %v536 = vmul.f32 %v535, %v449
    %538 = vrot.lane.b32.xlu0 %v535, 64
    %v539 = vpop.permute.xlu0 %538
    %v541 = vmul.f32 %v535, %v539
    %543 = vrot.lane.b32.xlu0 %v541, 32
    %v544 = vpop.permute.xlu0 %543
    %v546 = vadd.f32 %v536, %v544
    %v547 = vtanh.pop %v546
    %549 = vrot.lane.b32.xlu0 %v547, 64
    %v550 = vpop.permute.xlu0 %549
    %v552 = vmul.f32 %v535, %v550
    %554 = vrot.lane.b32.xlu0 %v552, 32
    %v555 = vpop.permute.xlu0 %554
    %v556 = vsel %vm60, %v555, 0
    %558 = vmatprep.subr.mxu0 0.0
    %559 = vmatpush1.msra.mxu0 %v30
    %560 = vmatprep.subr.mxu0 0.0
    %561 = vmatpush1.msra.mxu0 %v31
    %562 = vmatprep.subr.mxu0 0.0
    %563 = vmatpush1.msra.mxu0 %v32
    %564 = vmatprep.subr.mxu0 0.0
    %565 = vmatpush1.msra.mxu0 %v33
    %566 = vmatprep.subr.mxu0 0.0
    %567 = vmatpush1.msra.mxu0 0.0
    %568 = vmatprep.subr.mxu0 0.0
    %569 = vmatpush1.msra.mxu0 0.0
    %570 = vmatprep.subr.mxu0 0.0
    %571 = vmatpush1.msra.mxu0 0.0
    %572 = vmatprep.subr.mxu0 0.0
    %573 = vmatpush1.msra.mxu0 0.0
    %574 = vmatprep.subr.mxu0 0.0
    %575 = vmatpush1.msra.mxu0 0.0
    %576 = vmatprep.subr.mxu0 0.0
    %577 = vmatpush1.msra.mxu0 0.0
    %578 = vmatprep.subr.mxu0 0.0
    %579 = vmatpush1.msra.mxu0 0.0
    %580 = vmatprep.subr.mxu0 0.0
    %581 = vmatpush1.msra.mxu0 0.0
    %582 = vmatprep.subr.mxu0 0.0
    %583 = vmatpush1.msra.mxu0 0.0
    %584 = vmatprep.subr.mxu0 0.0
    %585 = vmatpush1.msra.mxu0 0.0
    %586 = vmatprep.subr.mxu0 0.0
    %587 = vmatpush1.msra.mxu0 0.0
    %588 = vmatprep.subr.mxu0 0.0
    %589 = vmatpush1.msra.mxu0 0.0
    %590 = vmatprep.subr.mxu0 0.0
    %591 = vmatpush1.msra.mxu0 0.0
    %592 = vmatprep.subr.mxu0 0.0
    %593 = vmatpush1.msra.mxu0 0.0
    %594 = vmatprep.subr.mxu0 0.0
    %595 = vmatpush1.msra.mxu0 0.0
    %596 = vmatprep.subr.mxu0 0.0
    %597 = vmatpush1.msra.mxu0 0.0
    %598 = vmatprep.subr.mxu0 0.0
    %599 = vmatpush1.msra.mxu0 0.0
    %600 = vmatprep.subr.mxu0 0.0
    %601 = vmatpush1.msra.mxu0 0.0
    %602 = vmatprep.subr.mxu0 0.0
    %603 = vmatpush1.msra.mxu0 0.0
    %604 = vmatprep.subr.mxu0 0.0
    %605 = vmatpush1.msra.mxu0 0.0
    %606 = vmatprep.subr.mxu0 0.0
    %607 = vmatpush1.msra.mxu0 0.0
    %608 = vmatprep.subr.mxu0 0.0
    %609 = vmatpush1.msra.mxu0 0.0
    %610 = vmatprep.subr.mxu0 0.0
    %611 = vmatpush1.msra.mxu0 0.0
    %612 = vmatprep.subr.mxu0 0.0
    %613 = vmatpush1.msra.mxu0 0.0
    %614 = vmatprep.subr.mxu0 0.0
    %615 = vmatpush1.msra.mxu0 0.0
    %616 = vmatprep.subr.mxu0 0.0
    %617 = vmatpush1.msra.mxu0 0.0
    %618 = vmatprep.subr.mxu0 0.0
    %619 = vmatpush1.msra.mxu0 0.0
    %620 = vmatprep.subr.mxu0 0.0
    %621 = vmatpush1.msra.mxu0 0.0
    %622 = vmatprep.mubr.f32.mxu0 0.0
    %623 = vmatmul.mubr.f32.gmra.mrb[0].mxu0 %v556
    %v624 = vpop.f32.mrb[0].mxu0
    %v625 = vadd.f32 0.0, %v624
    %v626 = vpop.f32.mrb[0].mxu0
    %627 = vdwg.mxu0
    %v628 = vadd.f32 %v325, %v625
    %v629 = vmul.f32 %v628, %v358
    %v630 = vtanh.pop %v629
    %v631 = vmul.f32 %v630, %v358
    %v632 = vadd.f32 %v631, %v359
    %v633 = vmul.f32 %v632, %v546
    %635 = vrot.lane.b32.xlu0 %v632, 64
    %v636 = vpop.permute.xlu0 %635
    %v638 = vmul.f32 %v632, %v636
    %640 = vrot.lane.b32.xlu0 %v638, 32
    %v641 = vpop.permute.xlu0 %640
    %v643 = vadd.f32 %v633, %v641
    %v644 = vtanh.pop %v643
    %646 = vrot.lane.b32.xlu0 %v644, 64
    %v647 = vpop.permute.xlu0 %646
    %v649 = vmul.f32 %v632, %v647
    %651 = vrot.lane.b32.xlu0 %v649, 32
    %v652 = vpop.permute.xlu0 %651
    %v653 = vsel %vm60, %v652, 0
    %655 = vmatprep.subr.mxu0 0.0
    %656 = vmatpush1.msra.mxu0 %v30
    %657 = vmatprep.subr.mxu0 0.0
    %658 = vmatpush1.msra.mxu0 %v31
    %659 = vmatprep.subr.mxu0 0.0
    %660 = vmatpush1.msra.mxu0 %v32
    %661 = vmatprep.subr.mxu0 0.0
    %662 = vmatpush1.msra.mxu0 %v33
    %663 = vmatprep.subr.mxu0 0.0
    %664 = vmatpush1.msra.mxu0 0.0
    %665 = vmatprep.subr.mxu0 0.0
    %666 = vmatpush1.msra.mxu0 0.0
    %667 = vmatprep.subr.mxu0 0.0
    %668 = vmatpush1.msra.mxu0 0.0
    %669 = vmatprep.subr.mxu0 0.0
    %670 = vmatpush1.msra.mxu0 0.0
    %671 = vmatprep.subr.mxu0 0.0
    %672 = vmatpush1.msra.mxu0 0.0
    %673 = vmatprep.subr.mxu0 0.0
    %674 = vmatpush1.msra.mxu0 0.0
    %675 = vmatprep.subr.mxu0 0.0
    %676 = vmatpush1.msra.mxu0 0.0
    %677 = vmatprep.subr.mxu0 0.0
    %678 = vmatpush1.msra.mxu0 0.0
    %679 = vmatprep.subr.mxu0 0.0
    %680 = vmatpush1.msra.mxu0 0.0
    %681 = vmatprep.subr.mxu0 0.0
    %682 = vmatpush1.msra.mxu0 0.0
    %683 = vmatprep.subr.mxu0 0.0
    %684 = vmatpush1.msra.mxu0 0.0
    %685 = vmatprep.subr.mxu0 0.0
    %686 = vmatpush1.msra.mxu0 0.0
    %687 = vmatprep.subr.mxu0 0.0
    %688 = vmatpush1.msra.mxu0 0.0
    %689 = vmatprep.subr.mxu0 0.0
    %690 = vmatpush1.msra.mxu0 0.0
    %691 = vmatprep.subr.mxu0 0.0
    %692 = vmatpush1.msra.mxu0 0.0
    %693 = vmatprep.subr.mxu0 0.0
    %694 = vmatpush1.msra.mxu0 0.0
    %695 = vmatprep.subr.mxu0 0.0
    %696 = vmatpush1.msra.mxu0 0.0
    %697 = vmatprep.subr.mxu0 0.0
    %698 = vmatpush1.msra.mxu0 0.0
    %699 = vmatprep.subr.mxu0 0.0
    %700 = vmatpush1.msra.mxu0 0.0
    %701 = vmatprep.subr.mxu0 0.0
    %702 = vmatpush1.msra.mxu0 0.0
    %703 = vmatprep.subr.mxu0 0.0
    %704 = vmatpush1.msra.mxu0 0.0
    %705 = vmatprep.subr.mxu0 0.0
    %706 = vmatpush1.msra.mxu0 0.0
    %707 = vmatprep.subr.mxu0 0.0
    %708 = vmatpush1.msra.mxu0 0.0
    %709 = vmatprep.subr.mxu0 0.0
    %710 = vmatpush1.msra.mxu0 0.0
    %711 = vmatprep.subr.mxu0 0.0
    %712 = vmatpush1.msra.mxu0 0.0
    %713 = vmatprep.subr.mxu0 0.0
    %714 = vmatpush1.msra.mxu0 0.0
    %715 = vmatprep.subr.mxu0 0.0
    %716 = vmatpush1.msra.mxu0 0.0
    %717 = vmatprep.subr.mxu0 0.0
    %718 = vmatpush1.msra.mxu0 0.0
    %719 = vmatprep.mubr.f32.mxu0 0.0
    %720 = vmatmul.mubr.f32.gmra.mrb[0].mxu0 %v653
    %v721 = vpop.f32.mrb[0].mxu0
    %v722 = vadd.f32 0.0, %v721
    %v723 = vpop.f32.mrb[0].mxu0
    %724 = vdwg.mxu0
    %v725 = vadd.f32 %v330, %v722
    %v726 = vmul.f32 %v725, %v358
    %v727 = vtanh.pop %v726
    %v728 = vmul.f32 %v727, %v358
    %v729 = vadd.f32 %v728, %v359
    %v730 = vmul.f32 %v729, %v643
    %732 = vrot.lane.b32.xlu0 %v729, 64
    %v733 = vpop.permute.xlu0 %732
    %v735 = vmul.f32 %v729, %v733
    %737 = vrot.lane.b32.xlu0 %v735, 32
    %v738 = vpop.permute.xlu0 %737
    %v740 = vadd.f32 %v730, %v738
    %v741 = vtanh.pop %v740
    %743 = vrot.lane.b32.xlu0 %v741, 64
    %v744 = vpop.permute.xlu0 %743
    %v746 = vmul.f32 %v729, %v744
    %748 = vrot.lane.b32.xlu0 %v746, 32
    %v749 = vpop.permute.xlu0 %748
    %v750 = vsel %vm60, %v749, 0
    %752 = vmatprep.subr.mxu0 0.0
    %753 = vmatpush1.msra.mxu0 %v30
    %754 = vmatprep.subr.mxu0 0.0
    %755 = vmatpush1.msra.mxu0 %v31
    %756 = vmatprep.subr.mxu0 0.0
    %757 = vmatpush1.msra.mxu0 %v32
    %758 = vmatprep.subr.mxu0 0.0
    %759 = vmatpush1.msra.mxu0 %v33
    %760 = vmatprep.subr.mxu0 0.0
    %761 = vmatpush1.msra.mxu0 0.0
    %762 = vmatprep.subr.mxu0 0.0
    %763 = vmatpush1.msra.mxu0 0.0
    %764 = vmatprep.subr.mxu0 0.0
    %765 = vmatpush1.msra.mxu0 0.0
    %766 = vmatprep.subr.mxu0 0.0
    %767 = vmatpush1.msra.mxu0 0.0
    %768 = vmatprep.subr.mxu0 0.0
    %769 = vmatpush1.msra.mxu0 0.0
    %770 = vmatprep.subr.mxu0 0.0
    %771 = vmatpush1.msra.mxu0 0.0
    %772 = vmatprep.subr.mxu0 0.0
    %773 = vmatpush1.msra.mxu0 0.0
    %774 = vmatprep.subr.mxu0 0.0
    %775 = vmatpush1.msra.mxu0 0.0
    %776 = vmatprep.subr.mxu0 0.0
    %777 = vmatpush1.msra.mxu0 0.0
    %778 = vmatprep.subr.mxu0 0.0
    %779 = vmatpush1.msra.mxu0 0.0
    %780 = vmatprep.subr.mxu0 0.0
    %781 = vmatpush1.msra.mxu0 0.0
    %782 = vmatprep.subr.mxu0 0.0
    %783 = vmatpush1.msra.mxu0 0.0
    %784 = vmatprep.subr.mxu0 0.0
    %785 = vmatpush1.msra.mxu0 0.0
    %786 = vmatprep.subr.mxu0 0.0
    %787 = vmatpush1.msra.mxu0 0.0
    %788 = vmatprep.subr.mxu0 0.0
    %789 = vmatpush1.msra.mxu0 0.0
    %790 = vmatprep.subr.mxu0 0.0
    %791 = vmatpush1.msra.mxu0 0.0
    %792 = vmatprep.subr.mxu0 0.0
    %793 = vmatpush1.msra.mxu0 0.0
    %794 = vmatprep.subr.mxu0 0.0
    %795 = vmatpush1.msra.mxu0 0.0
    %796 = vmatprep.subr.mxu0 0.0
    %797 = vmatpush1.msra.mxu0 0.0
    %798 = vmatprep.subr.mxu0 0.0
    %799 = vmatpush1.msra.mxu0 0.0
    %800 = vmatprep.subr.mxu0 0.0
    %801 = vmatpush1.msra.mxu0 0.0
    %802 = vmatprep.subr.mxu0 0.0
    %803 = vmatpush1.msra.mxu0 0.0
    %804 = vmatprep.subr.mxu0 0.0
    %805 = vmatpush1.msra.mxu0 0.0
    %806 = vmatprep.subr.mxu0 0.0
    %807 = vmatpush1.msra.mxu0 0.0
    %808 = vmatprep.subr.mxu0 0.0
    %809 = vmatpush1.msra.mxu0 0.0
    %810 = vmatprep.subr.mxu0 0.0
    %811 = vmatpush1.msra.mxu0 0.0
    %812 = vmatprep.subr.mxu0 0.0
    %813 = vmatpush1.msra.mxu0 0.0
    %814 = vmatprep.subr.mxu0 0.0
    %815 = vmatpush1.msra.mxu0 0.0
    %816 = vmatprep.mubr.f32.mxu0 0.0
    %817 = vmatmul.mubr.f32.gmra.mrb[0].mxu0 %v750
    %v818 = vpop.f32.mrb[0].mxu0
    %v819 = vadd.f32 0.0, %v818
    %v820 = vpop.f32.mrb[0].mxu0
    %821 = vdwg.mxu0
    %v822 = vadd.f32 %v335, %v819
    %v823 = vmul.f32 %v822, %v358
    %v824 = vtanh.pop %v823
    %v825 = vmul.f32 %v824, %v358
    %v826 = vadd.f32 %v825, %v359
    %v827 = vmul.f32 %v826, %v740
    %829 = vrot.lane.b32.xlu0 %v826, 64
    %v830 = vpop.permute.xlu0 %829
    %v832 = vmul.f32 %v826, %v830
    %834 = vrot.lane.b32.xlu0 %v832, 32
    %v835 = vpop.permute.xlu0 %834
    %v837 = vadd.f32 %v827, %v835
    %v838 = vtanh.pop %v837
    %840 = vrot.lane.b32.xlu0 %v838, 64
    %v841 = vpop.permute.xlu0 %840
    %v843 = vmul.f32 %v826, %v841
    %845 = vrot.lane.b32.xlu0 %v843, 32
    %v846 = vpop.permute.xlu0 %845
    %v847 = vsel %vm60, %v846, 0
    %849 = vmatprep.subr.mxu0 0.0
    %850 = vmatpush1.msra.mxu0 %v30
    %851 = vmatprep.subr.mxu0 0.0
    %852 = vmatpush1.msra.mxu0 %v31
    %853 = vmatprep.subr.mxu0 0.0
    %854 = vmatpush1.msra.mxu0 %v32
    %855 = vmatprep.subr.mxu0 0.0
    %856 = vmatpush1.msra.mxu0 %v33
    %857 = vmatprep.subr.mxu0 0.0
    %858 = vmatpush1.msra.mxu0 0.0
    %859 = vmatprep.subr.mxu0 0.0
    %860 = vmatpush1.msra.mxu0 0.0
    %861 = vmatprep.subr.mxu0 0.0
    %862 = vmatpush1.msra.mxu0 0.0
    %863 = vmatprep.subr.mxu0 0.0
    %864 = vmatpush1.msra.mxu0 0.0
    %865 = vmatprep.subr.mxu0 0.0
    %866 = vmatpush1.msra.mxu0 0.0
    %867 = vmatprep.subr.mxu0 0.0
    %868 = vmatpush1.msra.mxu0 0.0
    %869 = vmatprep.subr.mxu0 0.0
    %870 = vmatpush1.msra.mxu0 0.0
    %871 = vmatprep.subr.mxu0 0.0
    %872 = vmatpush1.msra.mxu0 0.0
    %873 = vmatprep.subr.mxu0 0.0
    %874 = vmatpush1.msra.mxu0 0.0
    %875 = vmatprep.subr.mxu0 0.0
    %876 = vmatpush1.msra.mxu0 0.0
    %877 = vmatprep.subr.mxu0 0.0
    %878 = vmatpush1.msra.mxu0 0.0
    %879 = vmatprep.subr.mxu0 0.0
    %880 = vmatpush1.msra.mxu0 0.0
    %881 = vmatprep.subr.mxu0 0.0
    %882 = vmatpush1.msra.mxu0 0.0
    %883 = vmatprep.subr.mxu0 0.0
    %884 = vmatpush1.msra.mxu0 0.0
    %885 = vmatprep.subr.mxu0 0.0
    %886 = vmatpush1.msra.mxu0 0.0
    %887 = vmatprep.subr.mxu0 0.0
    %888 = vmatpush1.msra.mxu0 0.0
    %889 = vmatprep.subr.mxu0 0.0
    %890 = vmatpush1.msra.mxu0 0.0
    %891 = vmatprep.subr.mxu0 0.0
    %892 = vmatpush1.msra.mxu0 0.0
    %893 = vmatprep.subr.mxu0 0.0
    %894 = vmatpush1.msra.mxu0 0.0
    %895 = vmatprep.subr.mxu0 0.0
    %896 = vmatpush1.msra.mxu0 0.0
    %897 = vmatprep.subr.mxu0 0.0
    %898 = vmatpush1.msra.mxu0 0.0
    %899 = vmatprep.subr.mxu0 0.0
    %900 = vmatpush1.msra.mxu0 0.0
    %901 = vmatprep.subr.mxu0 0.0
    %902 = vmatpush1.msra.mxu0 0.0
    %903 = vmatprep.subr.mxu0 0.0
    %904 = vmatpush1.msra.mxu0 0.0
    %905 = vmatprep.subr.mxu0 0.0
    %906 = vmatpush1.msra.mxu0 0.0
    %907 = vmatprep.subr.mxu0 0.0
    %908 = vmatpush1.msra.mxu0 0.0
    %909 = vmatprep.subr.mxu0 0.0
    %910 = vmatpush1.msra.mxu0 0.0
    %911 = vmatprep.subr.mxu0 0.0
    %912 = vmatpush1.msra.mxu0 0.0
    %913 = vmatprep.mubr.f32.mxu0 0.0
    %914 = vmatmul.mubr.f32.gmra.mrb[0].mxu0 %v847
    %v915 = vpop.f32.mrb[0].mxu0
    %v916 = vadd.f32 0.0, %v915
    %v917 = vpop.f32.mrb[0].mxu0
    %918 = vdwg.mxu0
    %v919 = vadd.f32 %v340, %v916
    %v920 = vmul.f32 %v919, %v358
    %v921 = vtanh.pop %v920
    %v922 = vmul.f32 %v921, %v358
    %v923 = vadd.f32 %v922, %v359
    %v924 = vmul.f32 %v923, %v837
    %926 = vrot.lane.b32.xlu0 %v923, 64
    %v927 = vpop.permute.xlu0 %926
    %v929 = vmul.f32 %v923, %v927
    %931 = vrot.lane.b32.xlu0 %v929, 32
    %v932 = vpop.permute.xlu0 %931
    %v934 = vadd.f32 %v924, %v932
    %v935 = vtanh.pop %v934
    %937 = vrot.lane.b32.xlu0 %v935, 64
    %v938 = vpop.permute.xlu0 %937
    %v940 = vmul.f32 %v923, %v938
    %942 = vrot.lane.b32.xlu0 %v940, 32
    %v943 = vpop.permute.xlu0 %942
    %v944 = vsel %vm60, %v943, 0
    %946 = vmatprep.subr.mxu0 0.0
    %947 = vmatpush1.msra.mxu0 %v30
    %948 = vmatprep.subr.mxu0 0.0
    %949 = vmatpush1.msra.mxu0 %v31
    %950 = vmatprep.subr.mxu0 0.0
    %951 = vmatpush1.msra.mxu0 %v32
    %952 = vmatprep.subr.mxu0 0.0
    %953 = vmatpush1.msra.mxu0 %v33
    %954 = vmatprep.subr.mxu0 0.0
    %955 = vmatpush1.msra.mxu0 0.0
    %956 = vmatprep.subr.mxu0 0.0
    %957 = vmatpush1.msra.mxu0 0.0
    %958 = vmatprep.subr.mxu0 0.0
    %959 = vmatpush1.msra.mxu0 0.0
    %960 = vmatprep.subr.mxu0 0.0
    %961 = vmatpush1.msra.mxu0 0.0
    %962 = vmatprep.subr.mxu0 0.0
    %963 = vmatpush1.msra.mxu0 0.0
    %964 = vmatprep.subr.mxu0 0.0
    %965 = vmatpush1.msra.mxu0 0.0
    %966 = vmatprep.subr.mxu0 0.0
    %967 = vmatpush1.msra.mxu0 0.0
    %968 = vmatprep.subr.mxu0 0.0
    %969 = vmatpush1.msra.mxu0 0.0
    %970 = vmatprep.subr.mxu0 0.0
    %971 = vmatpush1.msra.mxu0 0.0
    %972 = vmatprep.subr.mxu0 0.0
    %973 = vmatpush1.msra.mxu0 0.0
    %974 = vmatprep.subr.mxu0 0.0
    %975 = vmatpush1.msra.mxu0 0.0
    %976 = vmatprep.subr.mxu0 0.0
    %977 = vmatpush1.msra.mxu0 0.0
    %978 = vmatprep.subr.mxu0 0.0
    %979 = vmatpush1.msra.mxu0 0.0
    %980 = vmatprep.subr.mxu0 0.0
    %981 = vmatpush1.msra.mxu0 0.0
    %982 = vmatprep.subr.mxu0 0.0
    %983 = vmatpush1.msra.mxu0 0.0
    %984 = vmatprep.subr.mxu0 0.0
    %985 = vmatpush1.msra.mxu0 0.0
    %986 = vmatprep.subr.mxu0 0.0
    %987 = vmatpush1.msra.mxu0 0.0
    %988 = vmatprep.subr.mxu0 0.0
    %989 = vmatpush1.msra.mxu0 0.0
    %990 = vmatprep.subr.mxu0 0.0
    %991 = vmatpush1.msra.mxu0 0.0
    %992 = vmatprep.subr.mxu0 0.0
    %993 = vmatpush1.msra.mxu0 0.0
    %994 = vmatprep.subr.mxu0 0.0
    %995 = vmatpush1.msra.mxu0 0.0
    %996 = vmatprep.subr.mxu0 0.0
    %997 = vmatpush1.msra.mxu0 0.0
    %998 = vmatprep.subr.mxu0 0.0
    %999 = vmatpush1.msra.mxu0 0.0
    %1000 = vmatprep.subr.mxu0 0.0
    %1001 = vmatpush1.msra.mxu0 0.0
    %1002 = vmatprep.subr.mxu0 0.0
    %1003 = vmatpush1.msra.mxu0 0.0
    %1004 = vmatprep.subr.mxu0 0.0
    %1005 = vmatpush1.msra.mxu0 0.0
    %1006 = vmatprep.subr.mxu0 0.0
    %1007 = vmatpush1.msra.mxu0 0.0
    %1008 = vmatprep.subr.mxu0 0.0
    %1009 = vmatpush1.msra.mxu0 0.0
    %1010 = vmatprep.mubr.f32.mxu0 0.0
    %1011 = vmatmul.mubr.f32.gmra.mrb[0].mxu0 %v944
    %v1012 = vpop.f32.mrb[0].mxu0
    %v1013 = vadd.f32 0.0, %v1012
    %v1014 = vpop.f32.mrb[0].mxu0
    %1015 = vdwg.mxu0
    %v1016 = vadd.f32 %v345, %v1013
    %v1017 = vmul.f32 %v1016, %v358
    %v1018 = vtanh.pop %v1017
    %v1019 = vmul.f32 %v1018, %v358
    %v1020 = vadd.f32 %v1019, %v359
    %v1021 = vmul.f32 %v1020, %v934
    %1023 = vrot.lane.b32.xlu0 %v1020, 64
    %v1024 = vpop.permute.xlu0 %1023
    %v1026 = vmul.f32 %v1020, %v1024
    %1028 = vrot.lane.b32.xlu0 %v1026, 32
    %v1029 = vpop.permute.xlu0 %1028
    %v1031 = vadd.f32 %v1021, %v1029
    %v1032 = vtanh.pop %v1031
    %1034 = vrot.lane.b32.xlu0 %v1032, 64
    %v1035 = vpop.permute.xlu0 %1034
    %v1037 = vmul.f32 %v1020, %v1035
    %1039 = vrot.lane.b32.xlu0 %v1037, 32
    %v1040 = vpop.permute.xlu0 %1039
    %v1041 = vsel %vm60, %v1040, 0
    %1043 = vmatprep.subr.mxu0 0.0
    %1044 = vmatpush1.msra.mxu0 %v30
    %1045 = vmatprep.subr.mxu0 0.0
    %1046 = vmatpush1.msra.mxu0 %v31
    %1047 = vmatprep.subr.mxu0 0.0
    %1048 = vmatpush1.msra.mxu0 %v32
    %1049 = vmatprep.subr.mxu0 0.0
    %1050 = vmatpush1.msra.mxu0 %v33
    %1051 = vmatprep.subr.mxu0 0.0
    %1052 = vmatpush1.msra.mxu0 0.0
    %1053 = vmatprep.subr.mxu0 0.0
    %1054 = vmatpush1.msra.mxu0 0.0
    %1055 = vmatprep.subr.mxu0 0.0
    %1056 = vmatpush1.msra.mxu0 0.0
    %1057 = vmatprep.subr.mxu0 0.0
    %1058 = vmatpush1.msra.mxu0 0.0
    %1059 = vmatprep.subr.mxu0 0.0
    %1060 = vmatpush1.msra.mxu0 0.0
    %1061 = vmatprep.subr.mxu0 0.0
    %1062 = vmatpush1.msra.mxu0 0.0
    %1063 = vmatprep.subr.mxu0 0.0
    %1064 = vmatpush1.msra.mxu0 0.0
    %1065 = vmatprep.subr.mxu0 0.0
    %1066 = vmatpush1.msra.mxu0 0.0
    %1067 = vmatprep.subr.mxu0 0.0
    %1068 = vmatpush1.msra.mxu0 0.0
    %1069 = vmatprep.subr.mxu0 0.0
    %1070 = vmatpush1.msra.mxu0 0.0
    %1071 = vmatprep.subr.mxu0 0.0
    %1072 = vmatpush1.msra.mxu0 0.0
    %1073 = vmatprep.subr.mxu0 0.0
    %1074 = vmatpush1.msra.mxu0 0.0
    %1075 = vmatprep.subr.mxu0 0.0
    %1076 = vmatpush1.msra.mxu0 0.0
    %1077 = vmatprep.subr.mxu0 0.0
    %1078 = vmatpush1.msra.mxu0 0.0
    %1079 = vmatprep.subr.mxu0 0.0
    %1080 = vmatpush1.msra.mxu0 0.0
    %1081 = vmatprep.subr.mxu0 0.0
    %1082 = vmatpush1.msra.mxu0 0.0
    %1083 = vmatprep.subr.mxu0 0.0
    %1084 = vmatpush1.msra.mxu0 0.0
    %1085 = vmatprep.subr.mxu0 0.0
    %1086 = vmatpush1.msra.mxu0 0.0
    %1087 = vmatprep.subr.mxu0 0.0
    %1088 = vmatpush1.msra.mxu0 0.0
    %1089 = vmatprep.subr.mxu0 0.0
    %1090 = vmatpush1.msra.mxu0 0.0
    %1091 = vmatprep.subr.mxu0 0.0
    %1092 = vmatpush1.msra.mxu0 0.0
    %1093 = vmatprep.subr.mxu0 0.0
    %1094 = vmatpush1.msra.mxu0 0.0
    %1095 = vmatprep.subr.mxu0 0.0
    %1096 = vmatpush1.msra.mxu0 0.0
    %1097 = vmatprep.subr.mxu0 0.0
    %1098 = vmatpush1.msra.mxu0 0.0
    %1099 = vmatprep.subr.mxu0 0.0
    %1100 = vmatpush1.msra.mxu0 0.0
    %1101 = vmatprep.subr.mxu0 0.0
    %1102 = vmatpush1.msra.mxu0 0.0
    %1103 = vmatprep.subr.mxu0 0.0
    %1104 = vmatpush1.msra.mxu0 0.0
    %1105 = vmatprep.subr.mxu0 0.0
    %1106 = vmatpush1.msra.mxu0 0.0
    %1107 = vmatprep.mubr.f32.mxu0 0.0
    %1108 = vmatmul.mubr.f32.gmra.mrb[0].mxu0 %v1041
    %v1109 = vpop.f32.mrb[0].mxu0
    %v1110 = vadd.f32 0.0, %v1109
    %v1111 = vpop.f32.mrb[0].mxu0
    %1112 = vdwg.mxu0
    %v1113 = vadd.f32 %v350, %v1110
    %v1114 = vmul.f32 %v1113, %v358
    %v1115 = vtanh.pop %v1114
    %v1116 = vmul.f32 %v1115, %v358
    %v1117 = vadd.f32 %v1116, %v359
    %v1118 = vmul.f32 %v1117, %v1031
    %1120 = vrot.lane.b32.xlu0 %v1117, 64
    %v1121 = vpop.permute.xlu0 %1120
    %v1123 = vmul.f32 %v1117, %v1121
    %1125 = vrot.lane.b32.xlu0 %v1123, 32
    %v1126 = vpop.permute.xlu0 %1125
    %v1128 = vadd.f32 %v1118, %v1126
    %v1129 = vtanh.pop %v1128
    %1131 = vrot.lane.b32.xlu0 %v1129, 64
    %v1132 = vpop.permute.xlu0 %1131
    %v1134 = vmul.f32 %v1117, %v1132
    %1136 = vrot.lane.b32.xlu0 %v1134, 64
    %v1137 = vpop.permute.xlu0 %1136
    %v1139 = vsel %vm60, %v208, %v1137
    %v1140 = vlaneseq
    %v1141 = vshrl.u32 %v1140, 7
    %v1142 = vsub.s32 0, %v1141
    %v1143 = vrot.slane %v53, %v1142
    %vm1144 = vcmask 523264
    %v1146 = vsel %vm1144, %v1139, 0
    %1148 = vmatprep.subr.mxu0 0.0
    %1149 = vmatpush1.msra.mxu0 %v43
    %1150 = vmatprep.subr.mxu0 0.0
    %1151 = vmatpush1.msra.mxu0 %v44
    %1152 = vmatprep.subr.mxu0 0.0
    %1153 = vmatpush1.msra.mxu0 %v45
    %1154 = vmatprep.subr.mxu0 0.0
    %1155 = vmatpush1.msra.mxu0 %v46
    %1156 = vmatprep.subr.mxu0 0.0
    %1157 = vmatpush1.msra.mxu0 %v47
    %1158 = vmatprep.subr.mxu0 0.0
    %1159 = vmatpush1.msra.mxu0 %v48
    %1160 = vmatprep.subr.mxu0 0.0
    %1161 = vmatpush1.msra.mxu0 %v49
    %1162 = vmatprep.subr.mxu0 0.0
    %1163 = vmatpush1.msra.mxu0 %v50
    %1164 = vmatprep.subr.mxu0 0.0
    %1165 = vmatpush1.msra.mxu0 0.0
    %1166 = vmatprep.subr.mxu0 0.0
    %1167 = vmatpush1.msra.mxu0 0.0
    %1168 = vmatprep.subr.mxu0 0.0
    %1169 = vmatpush1.msra.mxu0 0.0
    %1170 = vmatprep.subr.mxu0 0.0
    %1171 = vmatpush1.msra.mxu0 0.0
    %1172 = vmatprep.subr.mxu0 0.0
    %1173 = vmatpush1.msra.mxu0 0.0
    %1174 = vmatprep.subr.mxu0 0.0
    %1175 = vmatpush1.msra.mxu0 0.0
    %1176 = vmatprep.subr.mxu0 0.0
    %1177 = vmatpush1.msra.mxu0 0.0
    %1178 = vmatprep.subr.mxu0 0.0
    %1179 = vmatpush1.msra.mxu0 0.0
    %1180 = vmatprep.subr.mxu0 0.0
    %1181 = vmatpush1.msra.mxu0 0.0
    %1182 = vmatprep.subr.mxu0 0.0
    %1183 = vmatpush1.msra.mxu0 0.0
    %1184 = vmatprep.subr.mxu0 0.0
    %1185 = vmatpush1.msra.mxu0 0.0
    %1186 = vmatprep.subr.mxu0 0.0
    %1187 = vmatpush1.msra.mxu0 0.0
    %1188 = vmatprep.subr.mxu0 0.0
    %1189 = vmatpush1.msra.mxu0 0.0
    %1190 = vmatprep.subr.mxu0 0.0
    %1191 = vmatpush1.msra.mxu0 0.0
    %1192 = vmatprep.subr.mxu0 0.0
    %1193 = vmatpush1.msra.mxu0 0.0
    %1194 = vmatprep.subr.mxu0 0.0
    %1195 = vmatpush1.msra.mxu0 0.0
    %1196 = vmatprep.subr.mxu0 0.0
    %1197 = vmatpush1.msra.mxu0 0.0
    %1198 = vmatprep.subr.mxu0 0.0
    %1199 = vmatpush1.msra.mxu0 0.0
    %1200 = vmatprep.subr.mxu0 0.0
    %1201 = vmatpush1.msra.mxu0 0.0
    %1202 = vmatprep.subr.mxu0 0.0
    %1203 = vmatpush1.msra.mxu0 0.0
    %1204 = vmatprep.subr.mxu0 0.0
    %1205 = vmatpush1.msra.mxu0 0.0
    %1206 = vmatprep.subr.mxu0 0.0
    %1207 = vmatpush1.msra.mxu0 0.0
    %1208 = vmatprep.subr.mxu0 0.0
    %1209 = vmatpush1.msra.mxu0 0.0
    %1210 = vmatprep.subr.mxu0 0.0
    %1211 = vmatpush1.msra.mxu0 0.0
    %1212 = vmatprep.mubr.f32.mxu0 0.0
    %1213 = vmatmul.mubr.f32.gmra.mrb[0].mxu0 %v1146
    %v1214 = vpop.f32.mrb[0].mxu0
    %v1215 = vadd.f32 %v1143, %v1214
    %v1216 = vpop.f32.mrb[0].mxu0
    %1217 = vdwg.mxu0
    %v1218 = vmax.f32 %v1215, 0.0
    %1220 = vrot.lane.b32.xlu0 %v208, 32
    %v1221 = vpop.permute.xlu0 %1220
    %v1223 = vsel %vm60, %v1218, %v1221
    %v1224 = vsel %vm1144, %v1223, 0.0
    %1225 = vst [vmem:[%s3] sm:$0xff] %v1224
    // Predicated region
    $region18: #{lstm_dec_forward.1} parent=1 // pred_check
      _
    $region19: #{lstm_dec_forward.1} parent=1 // pred_check_branch
      %1227 = sbr.rel (0) target = $region21
    $region20: #{lstm_dec_forward.1} parent=1 // pred_region
      _
    $region21: #{lstm_dec_forward.1} parent=1 // pred_fallthru
      _
    // Predicated region
    $region22: #{lstm_dec_forward.1} parent=1 // pred_check
      _
    $region23: #{lstm_dec_forward.1} parent=1 // pred_check_branch
      %1229 = sbr.rel (0) target = $region25
    $region24: #{lstm_dec_forward.1} parent=1 // pred_region
      _
    $region25: #{lstm_dec_forward.1} parent=1 // pred_fallthru
      _
    %1230 = vsyncpa [#allocation3], 1

</llo_original>
